<compile_context>
chip_gen: v6e
topology: v6e:2x2x1
jax: 0.10.0
libtpu: 0.0.40
codegen_flags: <defaults>
</compile_context>

<pallas_src>
import jax
import jax.numpy as jnp
from jax.experimental import pallas as pl
from jax.experimental.pallas import tpu as pltpu

_BN_EPS = 1e-5
_MATMUL_DTYPE = jnp.float32            # flip to jnp.bfloat16 on v6e/v7x for speed
_VMEM_LIMIT = 48 * 1024 * 1024         # safe under v7x's 64 MiB physical VMEM
_TB_VMEM_BUDGET = 12 * 1024 * 1024     # per-grid-step working-set target


# ------------------------------ in-kernel helpers -----------------------------

def _im2col_3x3_s1(col_ref, src, H, W, C):
    """Scatter the 9 zero-padded 3x3 taps of `src` (TB,H,W,C) into col_ref
    (TB,H,W,9*C) so ONE (M,9C)@(9C,Cout) MXU matmul computes the conv (stride 1,
    padding 1).  The 1-px strips a tap never covers are zero-filled each step
    (cheap, and correct under any grid partitioning)."""
    TB = src.shape[0]
    zdt = src.dtype
    for t in range(9):
        i, j = t // 3, t % 3
        p0, p1 = max(0, 1 - i), min(H, H + 1 - i)
        q0, q1 = max(0, 1 - j), min(W, W + 1 - j)
        lo = t * C
        col_ref[:, p0:p1, q0:q1, lo:lo + C] = src[:, p0 + i - 1:p1 + i - 1,
                                                  q0 + j - 1:q1 + j - 1, :]
        if p0 > 0:
            col_ref[:, 0:p0, :, lo:lo + C] = jnp.zeros((TB, p0, W, C), zdt)
        if p1 < H:
            col_ref[:, p1:H, :, lo:lo + C] = jnp.zeros((TB, H - p1, W, C), zdt)
        if q0 > 0:
            col_ref[:, p0:p1, 0:q0, lo:lo + C] = jnp.zeros((TB, p1 - p0, q0, C), zdt)
        if q1 < W:
            col_ref[:, p0:p1, q1:W, lo:lo + C] = jnp.zeros((TB, p1 - p0, W - q1, C), zdt)


# ------------------------------ fused kernels --------------------------------

def _make_block_kernel_s1(H, W, Cin, Cout, equal):
    """Fused BasicBlock, stride 1."""
    K1, K2 = 9 * Cin, 9 * Cout

    def kernel(x_ref, s1_ref, b1_ref, s2_ref, b2_ref, w1_ref, w2_ref, *rest):
        if equal:
            out_ref, col1_ref, col2_ref = rest
            wsc_ref = None
        else:
            wsc_ref, out_ref, col1_ref, col2_ref = rest

        TB = x_ref.shape[0]
        M = TB * H * W

        # BN1 + ReLU (folded inference batchnorm)
        x = x_ref[...]
        s1 = s1_ref[...].reshape(1, 1, 1, Cin)
        b1 = b1_ref[...].reshape(1, 1, 1, Cin)
        o = jnp.maximum(x * s1 + b1, 0.0)

        # conv1: im2col scatter (K = 9*Cin) then ONE MXU matmul
        _im2col_3x3_s1(col1_ref, o, H, W, Cin)
        acc = jnp.dot(col1_ref[...].reshape(M, K1).astype(_MATMUL_DTYPE),
                      w1_ref[...], preferred_element_type=jnp.float32)

        # residual: identity, or 1x1 shortcut fused on the resident BN1+ReLU tile
        if equal:
            res = x.reshape(M, Cout)                 # Cin == Cout
        else:
            res = jnp.dot(o.reshape(M, Cin).astype(_MATMUL_DTYPE), wsc_ref[...],
                          preferred_element_type=jnp.float32)

        # BN2 + ReLU
        h = jnp.maximum(acc * s2_ref[...] + b2_ref[...], 0.0)
        # TODO(synk): F.dropout skipped — dropRate defaults to 0.0 (no RNG path).
        h4 = h.reshape(TB, H, W, Cout)

        # conv2 (stride 1), accumulator seeded from the residual (fused add)
        _im2col_3x3_s1(col2_ref, h4, H, W, Cout)
        acc2 = res + jnp.dot(col2_ref[...].reshape(M, K2).astype(_MATMUL_DTYPE),
                             w2_ref[...], preferred_element_type=jnp.float32)

        out_ref[...] = acc2.reshape(TB, H, W, Cout).astype(out_ref.dtype)

    return kernel


def _make_block_kernel_s2(H, W, Cin, Cout):
    """Fused BasicBlock, stride 2 (always has a 1x1 shortcut).  Inputs are the 4
    row/col-parity phases of x, so every conv1 tap is a contiguous slice."""
    Ho, Wo = H // 2, W // 2
    K1, K2 = 9 * Cin, 9 * Cout

    def kernel(pee_ref, peo_ref, poe_ref, poo_ref,
               s1_ref, b1_ref, s2_ref, b2_ref,
               w1_ref, w2_ref, wsc_ref,
               out_ref, col1_ref, col2_ref):
        TB = pee_ref.shape[0]
        M = TB * Ho * Wo

        s1 = s1_ref[...].reshape(1, 1, 1, Cin)
        b1 = b1_ref[...].reshape(1, 1, 1, Cin)

        # BN1 + ReLU on the four phases (key = row parity char + col parity char)
        o = {}
        for key, ref in (("ee", pee_ref), ("eo", peo_ref),
                         ("oe", poe_ref), ("oo", poo_ref)):
            o[key] = jnp.maximum(ref[...] * s1 + b1, 0.0)

        # conv1 (3x3, stride 2, pad 1): out[p,q] needs o[2p+i-1, 2q+j-1]
        #   i==1 -> even rows ('e'); i in {0,2} -> odd rows ('o')
        #   i==0 shifts the source by -1 and leaves output row 0 at zero padding
        def sel(i):
            if i == 0:
                return "o", 1, -1      # (phase, first valid out index, src offset)
            if i == 1:
                return "e", 0, 0
            return "o", 0, 0

        zdt = jnp.float32
        for t in range(9):
            i, j = t // 3, t % 3
            rph, p0, dr = sel(i)
            cph, q0, dc = sel(j)
            src = o[rph + cph]
            lo = t * Cin
            col1_ref[:, p0:Ho, q0:Wo, lo:lo + Cin] = src[:, p0 + dr:Ho + dr,
                                                         q0 + dc:Wo + dc, :]
            if p0 > 0:
                col1_ref[:, 0:p0, :, lo:lo + Cin] = jnp.zeros((TB, p0, Wo, Cin), zdt)
            if q0 > 0:
                col1_ref[:, p0:Ho, 0:q0, lo:lo + Cin] = jnp.zeros(
                    (TB, Ho - p0, q0, Cin), zdt)

        acc = jnp.dot(col1_ref[...].reshape(M, K1).astype(_MATMUL_DTYPE),
                      w1_ref[...], preferred_element_type=jnp.float32)

        # 1x1 shortcut, stride 2: reads o[2p, 2q] == even/even phase (resident)
        res = jnp.dot(o["ee"].reshape(M, Cin).astype(_MATMUL_DTYPE), wsc_ref[...],
                      preferred_element_type=jnp.float32)

        # BN2 + ReLU
        h = jnp.maximum(acc * s2_ref[...] + b2_ref[...], 0.0)
        # TODO(synk): F.dropout skipped — dropRate defaults to 0.0 (no RNG path).
        h4 = h.reshape(TB, Ho, Wo, Cout)

        # conv2 (stride 1), accumulator seeded from the residual (fused add)
        _im2col_3x3_s1(col2_ref, h4, Ho, Wo, Cout)
        acc2 = res + jnp.dot(col2_ref[...].reshape(M, K2).astype(_MATMUL_DTYPE),
                             w2_ref[...], preferred_element_type=jnp.float32)

        out_ref[...] = acc2.reshape(TB, Ho, Wo, Cout).astype(out_ref.dtype)

    return kernel


# ------------------------------ block wrappers --------------------------------

def _w3x3_flat(w_oihw):
    # OIHW -> (kh,kw,Cin,Cout) -> (9*Cin, Cout); row index = (i*3+j)*Cin + c
    cout, cin, kh, kw = w_oihw.shape
    return jnp.transpose(w_oihw, (2, 3, 1, 0)).reshape(kh * kw * cin, cout)


def _w1x1_flat(w_oihw):
    cout, cin, _, _ = w_oihw.shape
    return jnp.transpose(w_oihw, (2, 3, 1, 0)).reshape(cin, cout)


def _padded_bytes(shape, dtype_bytes=4):
    """Rough VMEM footprint of a tile: last dim padded to 128 lanes, 2nd-last to 8."""
    s = list(shape)
    s[-1] = -(-s[-1] // 128) * 128
    if len(s) >= 2:
        s[-2] = -(-s[-2] // 8) * 8
    n = 1
    for d in s:
        n *= d
    return n * dtype_bytes


def _pick_tb(N, per_image_bytes, budget=_TB_VMEM_BUDGET):
    """Largest divisor of N under the VMEM budget, keeping >=2 grid steps when
    possible so both v7x TensorCores get work (v5e/v6e have 1 TC; no-op there)."""
    best = 1
    for tb in range(1, N + 1):
        if N % tb:
            continue
        if N >= 2 and N // tb < 2:
            continue
        if tb * per_image_bytes <= budget:
            best = tb
    return best


def _compiler_params():
    return pltpu.CompilerParams(
        dimension_semantics=("parallel",),   # batch axis shards across TCs (v7x)
        vmem_limit_bytes=_VMEM_LIMIT,
    )


def _block_call_s1(x, p):
    N, H, W, Cin = x.shape
    Cout = p["w1"].shape[0]
    equal = p["equal"]

    per_img = (2 * _padded_bytes((1, H, W, 9 * Cin))
               + 2 * _padded_bytes((1, H, W, 9 * Cout))
               + 2 * _padded_bytes((1, H, W, Cin))
               + 2 * _padded_bytes((1, H, W, Cout)))
    tb = _pick_tb(N, per_img)
    grid = (N // tb,)

    s1, b1 = p["bn1"]
    s2, b2 = p["bn2"]
    w1 = _w3x3_flat(p["w1"]).astype(_MATMUL_DTYPE)
    w2 = _w3x3_flat(p["w2"]).astype(_MATMUL_DTYPE)

    in_specs = [
        pl.BlockSpec((tb, H, W, Cin), lambda n: (n, 0, 0, 0)),
        pl.BlockSpec((1, Cin), lambda n: (0, 0)),
        pl.BlockSpec((1, Cin), lambda n: (0, 0)),
        pl.BlockSpec((1, Cout), lambda n: (0, 0)),
        pl.BlockSpec((1, Cout), lambda n: (0, 0)),
        pl.BlockSpec((9 * Cin, Cout), lambda n: (0, 0)),
        pl.BlockSpec((9 * Cout, Cout), lambda n: (0, 0)),
    ]
    args = [x, s1, b1, s2, b2, w1, w2]
    if not equal:
        in_specs.append(pl.BlockSpec((Cin, Cout), lambda n: (0, 0)))
        args.append(_w1x1_flat(p["w_short"]).astype(_MATMUL_DTYPE))

    return pl.pallas_call(
        _make_block_kernel_s1(H, W, Cin, Cout, equal),
        grid=grid,
        in_specs=in_specs,
        out_specs=pl.BlockSpec((tb, H, W, Cout), lambda n: (n, 0, 0, 0)),
        out_shape=jax.ShapeDtypeStruct((N, H, W, Cout), jnp.float32),
        scratch_shapes=[
            pltpu.VMEM((tb, H, W, 9 * Cin), jnp.float32),
            pltpu.VMEM((tb, H, W, 9 * Cout), jnp.float32),
        ],
        compiler_params=_compiler_params(),
    )(*args)


def _block_call_s2(x, p):
    N, H, W, Cin = x.shape
    assert H % 2 == 0 and W % 2 == 0, "stride-2 block requires even spatial dims"
    Ho, Wo = H // 2, W // 2
    Cout = p["w1"].shape[0]

    # Polyphase split of x (row/col parity).  These XLA strided slices cost one
    # extra HBM pass of x; on v5e consider allow_input_fusion or an in-kernel
    # split to remove it.
    p_ee = x[:, 0::2, 0::2, :]
    p_eo = x[:, 0::2, 1::2, :]
    p_oe = x[:, 1::2, 0::2, :]
    p_oo = x[:, 1::2, 1::2, :]

    per_img = (2 * _padded_bytes((1, Ho, Wo, 9 * Cin))
               + 2 * _padded_bytes((1, Ho, Wo, 9 * Cout))
               + 8 * _padded_bytes((1, Ho, Wo, Cin))
               + 2 * _padded_bytes((1, Ho, Wo, Cout)))
    tb = _pick_tb(N, per_img)
    grid = (N // tb,)

    s1, b1 = p["bn1"]
    s2, b2 = p["bn2"]
    w1 = _w3x3_flat(p["w1"]).astype(_MATMUL_DTYPE)
    w2 = _w3x3_flat(p["w2"]).astype(_MATMUL_DTYPE)
    wsc = _w1x1_flat(p["w_short"]).astype(_MATMUL_DTYPE)

    phase_spec = pl.BlockSpec((tb, Ho, Wo, Cin), lambda n: (n, 0, 0, 0))
    in_specs = [phase_spec, phase_spec, phase_spec, phase_spec,
                pl.BlockSpec((1, Cin), lambda n: (0, 0)),
                pl.BlockSpec((1, Cin), lambda n: (0, 0)),
                pl.BlockSpec((1, Cout), lambda n: (0, 0)),
                pl.BlockSpec((1, Cout), lambda n: (0, 0)),
                pl.BlockSpec((9 * Cin, Cout), lambda n: (0, 0)),
                pl.BlockSpec((9 * Cout, Cout), lambda n: (0, 0)),
                pl.BlockSpec((Cin, Cout), lambda n: (0, 0))]

    return pl.pallas_call(
        _make_block_kernel_s2(H, W, Cin, Cout),
        grid=grid,
        in_specs=in_specs,
        out_specs=pl.BlockSpec((tb, Ho, Wo, Cout), lambda n: (n, 0, 0, 0)),
        out_shape=jax.ShapeDtypeStruct((N, Ho, Wo, Cout), jnp.float32),
        scratch_shapes=[
            pltpu.VMEM((tb, Ho, Wo, 9 * Cin), jnp.float32),
            pltpu.VMEM((tb, Ho, Wo, 9 * Cout), jnp.float32),
        ],
        compiler_params=_compiler_params(),
    )(p_ee, p_eo, p_oe, p_oo, s1, b1, s2, b2, w1, w2, wsc)


# ----------------------------- model (forward) -------------------------------

def basic_block_forward(x, p):
    stride = p["stride"]
    if p["equal"]:
        assert stride == 1, "identity residual with stride>1 is unsupported (WRN never uses it)"
    if stride == 1:
        return _block_call_s1(x, p)
    elif stride == 2:
        return _block_call_s2(x, p)
    else:
        raise ValueError(f"unsupported stride {stride}")


def network_block_forward(x_nchw, layers):
    x = jnp.transpose(x_nchw, (0, 2, 3, 1))  # NCHW -> NHWC
    for p in layers:
        x = basic_block_forward(x, p)
    return jnp.transpose(x, (0, 3, 1, 2))    # NHWC -> NCHW


# ------------------------------ init (params) --------------------------------

def _conv_w(key, cout, cin, ksz):
    fan = cin * ksz * ksz
    return jax.random.normal(key, (cout, cin, ksz, ksz), jnp.float32) * jnp.sqrt(2.0 / fan)


def _bn_p(kg, kb, c):
    gamma = 1.0 + 0.1 * jax.random.normal(kg, (c,), jnp.float32)
    beta = 0.1 * jax.random.normal(kb, (c,), jnp.float32)
    mean = jnp.zeros((c,), jnp.float32)   # fresh running stats (PyTorch init)
    var = jnp.ones((c,), jnp.float32)
    scale = gamma / jnp.sqrt(var + _BN_EPS)
    shift = beta - mean * scale
    return scale.reshape(1, c), shift.reshape(1, c)


def init_basic_block(key, in_planes, out_planes, stride):
    k = jax.random.split(key, 7)
    equal = in_planes == out_planes
    return dict(
        equal=equal,
        stride=stride,
        bn1=_bn_p(k[0], k[1], in_planes),
        w1=_conv_w(k[2], out_planes, in_planes, 3),
        bn2=_bn_p(k[3], k[4], out_planes),
        w2=_conv_w(k[5], out_planes, out_planes, 3),
        w_short=None if equal else _conv_w(k[6], out_planes, in_planes, 1),
    )


def init_network_block(key, nb_layers, in_planes, out_planes, stride):
    keys = jax.random.split(key, nb_layers)
    layers = []
    for i in range(nb_layers):
        ip = in_planes if i == 0 else out_planes
        st = stride if i == 0 else 1
        layers.append(init_basic_block(keys[i], ip, out_planes, st))
    return layers


# ----------------------------- pure-JAX reference ----------------------------

def _ref_conv(x, w_oihw, stride, pad):
    return jax.lax.conv_general_dilated(
        x,
        jnp.transpose(w_oihw, (2, 3, 1, 0)),  # OIHW -> HWIO
        window_strides=(stride, stride),
        padding=[(pad, pad), (pad, pad)],
        dimension_numbers=("NHWC", "HWIO", "NHWC"),
    )


def ref_forward(x_nchw, layers):
    x = jnp.transpose(x_nchw, (0, 2, 3, 1))
    for p in layers:
        s1, b1 = p["bn1"]
        o = jnp.maximum(x * s1.reshape(1, 1, 1, -1) + b1.reshape(1, 1, 1, -1), 0.0)
        residual = x if p["equal"] else _ref_conv(o, p["w_short"], p["stride"], 0)
        out = _ref_conv(o, p["w1"], p["stride"], 1)
        s2, b2 = p["bn2"]
        out = jnp.maximum(out * s2.reshape(1, 1, 1, -1) + b2.reshape(1, 1, 1, -1), 0.0)
        x = _ref_conv(out, p["w2"], 1, 1) + residual
    return jnp.transpose(x, (0, 3, 1, 2))


# ---------------------------------- main -------------------------------------

if __name__ == "__main__":
    key = jax.random.PRNGKey(0)
    kx, kp = jax.random.split(key)

    # NetworkBlock(nb_layers=2, in_planes=16, out_planes=32, block=BasicBlock, stride=2)
    x = jax.random.normal(kx, (2, 16, 16, 16), jnp.float32)  # NCHW
    layers = init_network_block(kp, nb_layers=2, in_planes=16, out_planes=32, stride=2)

    out = network_block_forward(x, layers)
    out = jax.block_until_ready(out)
    assert out.shape == (2, 32, 8, 8), out.shape

    ref = ref_forward(x, layers)
    err = float(jnp.max(jnp.abs(out - ref)))
    assert err < 1e-3, f"max abs error vs reference: {err}"

    print("KERNEL_OK")
</pallas_src>

<mosaic_0001>
module attributes {stable_mosaic.version = 11 : i64} {
  func.func @kernel(%arg0: i32, %arg1: memref<1x8x8x16xf32, #tpu.memory_space<vmem>>, %arg2: memref<1x8x8x16xf32, #tpu.memory_space<vmem>>, %arg3: memref<1x8x8x16xf32, #tpu.memory_space<vmem>>, %arg4: memref<1x8x8x16xf32, #tpu.memory_space<vmem>>, %arg5: memref<1x16xf32, #tpu.memory_space<vmem>>, %arg6: memref<1x16xf32, #tpu.memory_space<vmem>>, %arg7: memref<1x32xf32, #tpu.memory_space<vmem>>, %arg8: memref<1x32xf32, #tpu.memory_space<vmem>>, %arg9: memref<144x32xf32, #tpu.memory_space<vmem>>, %arg10: memref<288x32xf32, #tpu.memory_space<vmem>>, %arg11: memref<16x32xf32, #tpu.memory_space<vmem>>, %arg12: memref<1x8x8x32xf32, #tpu.memory_space<vmem>>, %arg13: memref<1x8x8x144xf32, #tpu.memory_space<vmem>>, %arg14: memref<1x8x8x288xf32, #tpu.memory_space<vmem>>) attributes {dimension_semantics = [#tpu.dimension_semantics<parallel>], iteration_bounds = array<i64: 2>, scalar_prefetch = 0 : i64, scratch_operands = 2 : i64, tpu.core_type = #tpu.core_type<tc>, window_params = [{transform_indices = @transform_0, window_bounds = array<i64: 1, 8, 8, 16>}, {transform_indices = @transform_1, window_bounds = array<i64: 1, 8, 8, 16>}, {transform_indices = @transform_2, window_bounds = array<i64: 1, 8, 8, 16>}, {transform_indices = @transform_3, window_bounds = array<i64: 1, 8, 8, 16>}, {pipeline_mode = #tpu.pipeline_mode<synchronous>, transform_indices = @transform_4, window_bounds = array<i64: 1, 16>}, {pipeline_mode = #tpu.pipeline_mode<synchronous>, transform_indices = @transform_5, window_bounds = array<i64: 1, 16>}, {pipeline_mode = #tpu.pipeline_mode<synchronous>, transform_indices = @transform_6, window_bounds = array<i64: 1, 32>}, {pipeline_mode = #tpu.pipeline_mode<synchronous>, transform_indices = @transform_7, window_bounds = array<i64: 1, 32>}, {pipeline_mode = #tpu.pipeline_mode<synchronous>, transform_indices = @transform_8, window_bounds = array<i64: 144, 32>}, {pipeline_mode = #tpu.pipeline_mode<synchronous>, transform_indices = @transform_9, window_bounds = array<i64: 288, 32>}, {pipeline_mode = #tpu.pipeline_mode<synchronous>, transform_indices = @transform_10, window_bounds = array<i64: 16, 32>}, {transform_indices = @transform_11, window_bounds = array<i64: 1, 8, 8, 32>}]} {
    %c0 = arith.constant 0 : index
    %c0_0 = arith.constant 0 : index
    %0 = vector.load %arg5[%c0, %c0_0] : memref<1x16xf32, #tpu.memory_space<vmem>>, vector<1x16xf32>
    %1 = vector.shape_cast %0 : vector<1x16xf32> to vector<1x1x1x16xf32>
    %c0_1 = arith.constant 0 : index
    %c0_2 = arith.constant 0 : index
    %2 = vector.load %arg6[%c0_1, %c0_2] : memref<1x16xf32, #tpu.memory_space<vmem>>, vector<1x16xf32>
    %3 = vector.shape_cast %2 : vector<1x16xf32> to vector<1x1x1x16xf32>
    %c0_3 = arith.constant 0 : index
    %c0_4 = arith.constant 0 : index
    %c0_5 = arith.constant 0 : index
    %c0_6 = arith.constant 0 : index
    %4 = vector.load %arg1[%c0_3, %c0_4, %c0_5, %c0_6] : memref<1x8x8x16xf32, #tpu.memory_space<vmem>>, vector<1x8x8x16xf32>
    %5 = vector.broadcast %1 : vector<1x1x1x16xf32> to vector<1x8x8x16xf32>
    %6 = arith.mulf %4, %5 : vector<1x8x8x16xf32>
    %7 = vector.broadcast %3 : vector<1x1x1x16xf32> to vector<1x8x8x16xf32>
    %8 = arith.addf %6, %7 : vector<1x8x8x16xf32>
    %cst = arith.constant 0.000000e+00 : f32
    %9 = vector.broadcast %cst : f32 to vector<1x8x8x16xf32>
    %10 = arith.maximumf %8, %9 : vector<1x8x8x16xf32>
    %c0_7 = arith.constant 0 : index
    %c0_8 = arith.constant 0 : index
    %c0_9 = arith.constant 0 : index
    %c0_10 = arith.constant 0 : index
    %11 = vector.load %arg2[%c0_7, %c0_8, %c0_9, %c0_10] : memref<1x8x8x16xf32, #tpu.memory_space<vmem>>, vector<1x8x8x16xf32>
    %12 = vector.broadcast %1 : vector<1x1x1x16xf32> to vector<1x8x8x16xf32>
    %13 = arith.mulf %11, %12 : vector<1x8x8x16xf32>
    %14 = vector.broadcast %3 : vector<1x1x1x16xf32> to vector<1x8x8x16xf32>
    %15 = arith.addf %13, %14 : vector<1x8x8x16xf32>
    %cst_11 = arith.constant 0.000000e+00 : f32
    %16 = vector.broadcast %cst_11 : f32 to vector<1x8x8x16xf32>
    %17 = arith.maximumf %15, %16 : vector<1x8x8x16xf32>
    %c0_12 = arith.constant 0 : index
    %c0_13 = arith.constant 0 : index
    %c0_14 = arith.constant 0 : index
    %c0_15 = arith.constant 0 : index
    %18 = vector.load %arg3[%c0_12, %c0_13, %c0_14, %c0_15] : memref<1x8x8x16xf32, #tpu.memory_space<vmem>>, vector<1x8x8x16xf32>
    %19 = vector.broadcast %1 : vector<1x1x1x16xf32> to vector<1x8x8x16xf32>
    %20 = arith.mulf %18, %19 : vector<1x8x8x16xf32>
    %21 = vector.broadcast %3 : vector<1x1x1x16xf32> to vector<1x8x8x16xf32>
    %22 = arith.addf %20, %21 : vector<1x8x8x16xf32>
    %cst_16 = arith.constant 0.000000e+00 : f32
    %23 = vector.broadcast %cst_16 : f32 to vector<1x8x8x16xf32>
    %24 = arith.maximumf %22, %23 : vector<1x8x8x16xf32>
    %c0_17 = arith.constant 0 : index
    %c0_18 = arith.constant 0 : index
    %c0_19 = arith.constant 0 : index
    %c0_20 = arith.constant 0 : index
    %25 = vector.load %arg4[%c0_17, %c0_18, %c0_19, %c0_20] : memref<1x8x8x16xf32, #tpu.memory_space<vmem>>, vector<1x8x8x16xf32>
    %26 = vector.broadcast %1 : vector<1x1x1x16xf32> to vector<1x8x8x16xf32>
    %27 = arith.mulf %25, %26 : vector<1x8x8x16xf32>
    %28 = vector.broadcast %3 : vector<1x1x1x16xf32> to vector<1x8x8x16xf32>
    %29 = arith.addf %27, %28 : vector<1x8x8x16xf32>
    %cst_21 = arith.constant 0.000000e+00 : f32
    %30 = vector.broadcast %cst_21 : f32 to vector<1x8x8x16xf32>
    %31 = arith.maximumf %29, %30 : vector<1x8x8x16xf32>
    %32 = vector.extract_strided_slice %31 {offsets = [0, 0, 0, 0], sizes = [1, 7, 7, 16], strides = [1, 1, 1, 1]} : vector<1x8x8x16xf32> to vector<1x7x7x16xf32>
    %c0_22 = arith.constant 0 : index
    %c1 = arith.constant 1 : index
    %c1_23 = arith.constant 1 : index
    %c0_24 = arith.constant 0 : index
    %33 = vector.load %arg13[%c0_22, %c1, %c1_23, %c0_24] : memref<1x8x8x144xf32, #tpu.memory_space<vmem>>, vector<1x7x7x16xf32>
    tpu.vector_store %arg13[%c0_22, %c1, %c1_23, %c0_24], %32 {strides = array<i32>} : memref<1x8x8x144xf32, #tpu.memory_space<vmem>>, vector<1x7x7x16xf32>,
    %cst_25 = arith.constant 0.000000e+00 : f32
    %34 = vector.broadcast %cst_25 : f32 to vector<1x1x8x16xf32>
    %c0_26 = arith.constant 0 : index
    %c0_27 = arith.constant 0 : index
    %c0_28 = arith.constant 0 : index
    %c0_29 = arith.constant 0 : index
    %35 = vector.load %arg13[%c0_26, %c0_27, %c0_28, %c0_29] : memref<1x8x8x144xf32, #tpu.memory_space<vmem>>, vector<1x1x8x16xf32>
    tpu.vector_store %arg13[%c0_26, %c0_27, %c0_28, %c0_29], %34 {strides = array<i32>} : memref<1x8x8x144xf32, #tpu.memory_space<vmem>>, vector<1x1x8x16xf32>,
    %cst_30 = arith.constant 0.000000e+00 : f32
    %36 = vector.broadcast %cst_30 : f32 to vector<1x7x1x16xf32>
    %c0_31 = arith.constant 0 : index
    %c1_32 = arith.constant 1 : index
    %c0_33 = arith.constant 0 : index
    %c0_34 = arith.constant 0 : index
    %37 = vector.load %arg13[%c0_31, %c1_32, %c0_33, %c0_34] : memref<1x8x8x144xf32, #tpu.memory_space<vmem>>, vector<1x7x1x16xf32>
    tpu.vector_store %arg13[%c0_31, %c1_32, %c0_33, %c0_34], %36 {strides = array<i32>} : memref<1x8x8x144xf32, #tpu.memory_space<vmem>>, vector<1x7x1x16xf32>,
    %38 = vector.extract_strided_slice %24 {offsets = [0, 0, 0, 0], sizes = [1, 7, 8, 16], strides = [1, 1, 1, 1]} : vector<1x8x8x16xf32> to vector<1x7x8x16xf32>
    %c0_35 = arith.constant 0 : index
    %c1_36 = arith.constant 1 : index
    %c0_37 = arith.constant 0 : index
    %c16 = arith.constant 16 : index
    %39 = vector.load %arg13[%c0_35, %c1_36, %c0_37, %c16] : memref<1x8x8x144xf32, #tpu.memory_space<vmem>>, vector<1x7x8x16xf32>
    tpu.vector_store %arg13[%c0_35, %c1_36, %c0_37, %c16], %38 {strides = array<i32>} : memref<1x8x8x144xf32, #tpu.memory_space<vmem>>, vector<1x7x8x16xf32>,
    %cst_38 = arith.constant 0.000000e+00 : f32
    %40 = vector.broadcast %cst_38 : f32 to vector<1x1x8x16xf32>
    %c0_39 = arith.constant 0 : index
    %c0_40 = arith.constant 0 : index
    %c0_41 = arith.constant 0 : index
    %c16_42 = arith.constant 16 : index
    %41 = vector.load %arg13[%c0_39, %c0_40, %c0_41, %c16_42] : memref<1x8x8x144xf32, #tpu.memory_space<vmem>>, vector<1x1x8x16xf32>
    tpu.vector_store %arg13[%c0_39, %c0_40, %c0_41, %c16_42], %40 {strides = array<i32>} : memref<1x8x8x144xf32, #tpu.memory_space<vmem>>, vector<1x1x8x16xf32>,
    %42 = vector.extract_strided_slice %31 {offsets = [0, 0, 0, 0], sizes = [1, 7, 8, 16], strides = [1, 1, 1, 1]} : vector<1x8x8x16xf32> to vector<1x7x8x16xf32>
    %c0_43 = arith.constant 0 : index
    %c1_44 = arith.constant 1 : index
    %c0_45 = arith.constant 0 : index
    %c32 = arith.constant 32 : index
    %43 = vector.load %arg13[%c0_43, %c1_44, %c0_45, %c32] : memref<1x8x8x144xf32, #tpu.memory_space<vmem>>, vector<1x7x8x16xf32>
    tpu.vector_store %arg13[%c0_43, %c1_44, %c0_45, %c32], %42 {strides = array<i32>} : memref<1x8x8x144xf32, #tpu.memory_space<vmem>>, vector<1x7x8x16xf32>,
    %cst_46 = arith.constant 0.000000e+00 : f32
    %44 = vector.broadcast %cst_46 : f32 to vector<1x1x8x16xf32>
    %c0_47 = arith.constant 0 : index
    %c0_48 = arith.constant 0 : index
    %c0_49 = arith.constant 0 : index
    %c32_50 = arith.constant 32 : index
    %45 = vector.load %arg13[%c0_47, %c0_48, %c0_49, %c32_50] : memref<1x8x8x144xf32, #tpu.memory_space<vmem>>, vector<1x1x8x16xf32>
    tpu.vector_store %arg13[%c0_47, %c0_48, %c0_49, %c32_50], %44 {strides = array<i32>} : memref<1x8x8x144xf32, #tpu.memory_space<vmem>>, vector<1x1x8x16xf32>,
    %46 = vector.extract_strided_slice %17 {offsets = [0, 0, 0, 0], sizes = [1, 8, 7, 16], strides = [1, 1, 1, 1]} : vector<1x8x8x16xf32> to vector<1x8x7x16xf32>
    %c0_51 = arith.constant 0 : index
    %c0_52 = arith.constant 0 : index
    %c1_53 = arith.constant 1 : index
    %c48 = arith.constant 48 : index
    %47 = vector.load %arg13[%c0_51, %c0_52, %c1_53, %c48] : memref<1x8x8x144xf32, #tpu.memory_space<vmem>>, vector<1x8x7x16xf32>
    tpu.vector_store %arg13[%c0_51, %c0_52, %c1_53, %c48], %46 {strides = array<i32>} : memref<1x8x8x144xf32, #tpu.memory_space<vmem>>, vector<1x8x7x16xf32>,
    %cst_54 = arith.constant 0.000000e+00 : f32
    %48 = vector.broadcast %cst_54 : f32 to vector<1x8x1x16xf32>
    %c0_55 = arith.constant 0 : index
    %c0_56 = arith.constant 0 : index
    %c0_57 = arith.constant 0 : index
    %c48_58 = arith.constant 48 : index
    %49 = vector.load %arg13[%c0_55, %c0_56, %c0_57, %c48_58] : memref<1x8x8x144xf32, #tpu.memory_space<vmem>>, vector<1x8x1x16xf32>
    tpu.vector_store %arg13[%c0_55, %c0_56, %c0_57, %c48_58], %48 {strides = array<i32>} : memref<1x8x8x144xf32, #tpu.memory_space<vmem>>, vector<1x8x1x16xf32>,
    %c0_59 = arith.constant 0 : index
    %c0_60 = arith.constant 0 : index
    %c0_61 = arith.constant 0 : index
    %c64 = arith.constant 64 : index
    %50 = vector.load %arg13[%c0_59, %c0_60, %c0_61, %c64] : memref<1x8x8x144xf32, #tpu.memory_space<vmem>>, vector<1x8x8x16xf32>
    tpu.vector_store %arg13[%c0_59, %c0_60, %c0_61, %c64], %10 {strides = array<i32>} : memref<1x8x8x144xf32, #tpu.memory_space<vmem>>, vector<1x8x8x16xf32>,
    %c0_62 = arith.constant 0 : index
    %c0_63 = arith.constant 0 : index
    %c0_64 = arith.constant 0 : index
    %c80 = arith.constant 80 : index
    %51 = vector.load %arg13[%c0_62, %c0_63, %c0_64, %c80] : memref<1x8x8x144xf32, #tpu.memory_space<vmem>>, vector<1x8x8x16xf32>
    tpu.vector_store %arg13[%c0_62, %c0_63, %c0_64, %c80], %17 {strides = array<i32>} : memref<1x8x8x144xf32, #tpu.memory_space<vmem>>, vector<1x8x8x16xf32>,
    %52 = vector.extract_strided_slice %31 {offsets = [0, 0, 0, 0], sizes = [1, 8, 7, 16], strides = [1, 1, 1, 1]} : vector<1x8x8x16xf32> to vector<1x8x7x16xf32>
    %c0_65 = arith.constant 0 : index
    %c0_66 = arith.constant 0 : index
    %c1_67 = arith.constant 1 : index
    %c96 = arith.constant 96 : index
    %53 = vector.load %arg13[%c0_65, %c0_66, %c1_67, %c96] : memref<1x8x8x144xf32, #tpu.memory_space<vmem>>, vector<1x8x7x16xf32>
    tpu.vector_store %arg13[%c0_65, %c0_66, %c1_67, %c96], %52 {strides = array<i32>} : memref<1x8x8x144xf32, #tpu.memory_space<vmem>>, vector<1x8x7x16xf32>,
    %cst_68 = arith.constant 0.000000e+00 : f32
    %54 = vector.broadcast %cst_68 : f32 to vector<1x8x1x16xf32>
    %c0_69 = arith.constant 0 : index
    %c0_70 = arith.constant 0 : index
    %c0_71 = arith.constant 0 : index
    %c96_72 = arith.constant 96 : index
    %55 = vector.load %arg13[%c0_69, %c0_70, %c0_71, %c96_72] : memref<1x8x8x144xf32, #tpu.memory_space<vmem>>, vector<1x8x1x16xf32>
    tpu.vector_store %arg13[%c0_69, %c0_70, %c0_71, %c96_72], %54 {strides = array<i32>} : memref<1x8x8x144xf32, #tpu.memory_space<vmem>>, vector<1x8x1x16xf32>,
    %c0_73 = arith.constant 0 : index
    %c0_74 = arith.constant 0 : index
    %c0_75 = arith.constant 0 : index
    %c112 = arith.constant 112 : index
    %56 = vector.load %arg13[%c0_73, %c0_74, %c0_75, %c112] : memref<1x8x8x144xf32, #tpu.memory_space<vmem>>, vector<1x8x8x16xf32>
    tpu.vector_store %arg13[%c0_73, %c0_74, %c0_75, %c112], %24 {strides = array<i32>} : memref<1x8x8x144xf32, #tpu.memory_space<vmem>>, vector<1x8x8x16xf32>,
    %c0_76 = arith.constant 0 : index
    %c0_77 = arith.constant 0 : index
    %c0_78 = arith.constant 0 : index
    %c128 = arith.constant 128 : index
    %57 = vector.load %arg13[%c0_76, %c0_77, %c0_78, %c128] : memref<1x8x8x144xf32, #tpu.memory_space<vmem>>, vector<1x8x8x16xf32>
    tpu.vector_store %arg13[%c0_76, %c0_77, %c0_78, %c128], %31 {strides = array<i32>} : memref<1x8x8x144xf32, #tpu.memory_space<vmem>>, vector<1x8x8x16xf32>,
    %c0_79 = arith.constant 0 : index
    %c0_80 = arith.constant 0 : index
    %c0_81 = arith.constant 0 : index
    %c0_82 = arith.constant 0 : index
    %58 = vector.load %arg13[%c0_79, %c0_80, %c0_81, %c0_82] : memref<1x8x8x144xf32, #tpu.memory_space<vmem>>, vector<1x8x8x144xf32>
    %59 = vector.shape_cast %58 : vector<1x8x8x144xf32> to vector<64x144xf32>
    %c0_83 = arith.constant 0 : index
    %c0_84 = arith.constant 0 : index
    %60 = vector.load %arg9[%c0_83, %c0_84] : memref<144x32xf32, #tpu.memory_space<vmem>>, vector<144x32xf32>
    %cst_85 = arith.constant dense<0.000000e+00> : vector<64x32xf32>
    %61 = tpu.matmul %59, %60, %cst_85 {dimension_numbers = #tpu.dot_dimension_numbers<[1], [0], [0], [1], [0, 0, 1, 1], [], []>} : vector<64x144xf32>, vector<144x32xf32>, vector<64x32xf32> -> vector<64x32xf32>
    %62 = vector.shape_cast %10 : vector<1x8x8x16xf32> to vector<64x16xf32>
    %c0_86 = arith.constant 0 : index
    %c0_87 = arith.constant 0 : index
    %63 = vector.load %arg11[%c0_86, %c0_87] : memref<16x32xf32, #tpu.memory_space<vmem>>, vector<16x32xf32>
    %cst_88 = arith.constant dense<0.000000e+00> : vector<64x32xf32>
    %64 = tpu.matmul %62, %63, %cst_88 {dimension_numbers = #tpu.dot_dimension_numbers<[1], [0], [0], [1], [0, 0, 1, 1], [], []>} : vector<64x16xf32>, vector<16x32xf32>, vector<64x32xf32> -> vector<64x32xf32>
    %c0_89 = arith.constant 0 : index
    %c0_90 = arith.constant 0 : index
    %65 = vector.load %arg7[%c0_89, %c0_90] : memref<1x32xf32, #tpu.memory_space<vmem>>, vector<1x32xf32>
    %66 = vector.broadcast %65 : vector<1x32xf32> to vector<64x32xf32>
    %67 = arith.mulf %61, %66 : vector<64x32xf32>
    %c0_91 = arith.constant 0 : index
    %c0_92 = arith.constant 0 : index
    %68 = vector.load %arg8[%c0_91, %c0_92] : memref<1x32xf32, #tpu.memory_space<vmem>>, vector<1x32xf32>
    %69 = vector.broadcast %68 : vector<1x32xf32> to vector<64x32xf32>
    %70 = arith.addf %67, %69 : vector<64x32xf32>
    %cst_93 = arith.constant 0.000000e+00 : f32
    %71 = vector.broadcast %cst_93 : f32 to vector<64x32xf32>
    %72 = arith.maximumf %70, %71 : vector<64x32xf32>
    %73 = vector.shape_cast %72 : vector<64x32xf32> to vector<1x8x8x32xf32>
    %74 = vector.extract_strided_slice %73 {offsets = [0, 0, 0, 0], sizes = [1, 7, 7, 32], strides = [1, 1, 1, 1]} : vector<1x8x8x32xf32> to vector<1x7x7x32xf32>
    %c0_94 = arith.constant 0 : index
    %c1_95 = arith.constant 1 : index
    %c1_96 = arith.constant 1 : index
    %c0_97 = arith.constant 0 : index
    %75 = vector.load %arg14[%c0_94, %c1_95, %c1_96, %c0_97] : memref<1x8x8x288xf32, #tpu.memory_space<vmem>>, vector<1x7x7x32xf32>
    tpu.vector_store %arg14[%c0_94, %c1_95, %c1_96, %c0_97], %74 {strides = array<i32>} : memref<1x8x8x288xf32, #tpu.memory_space<vmem>>, vector<1x7x7x32xf32>,
    %cst_98 = arith.constant 0.000000e+00 : f32
    %76 = vector.broadcast %cst_98 : f32 to vector<1x1x8x32xf32>
    %c0_99 = arith.constant 0 : index
    %c0_100 = arith.constant 0 : index
    %c0_101 = arith.constant 0 : index
    %c0_102 = arith.constant 0 : index
    %77 = vector.load %arg14[%c0_99, %c0_100, %c0_101, %c0_102] : memref<1x8x8x288xf32, #tpu.memory_space<vmem>>, vector<1x1x8x32xf32>
    tpu.vector_store %arg14[%c0_99, %c0_100, %c0_101, %c0_102], %76 {strides = array<i32>} : memref<1x8x8x288xf32, #tpu.memory_space<vmem>>, vector<1x1x8x32xf32>,
    %cst_103 = arith.constant 0.000000e+00 : f32
    %78 = vector.broadcast %cst_103 : f32 to vector<1x7x1x32xf32>
    %c0_104 = arith.constant 0 : index
    %c1_105 = arith.constant 1 : index
    %c0_106 = arith.constant 0 : index
    %c0_107 = arith.constant 0 : index
    %79 = vector.load %arg14[%c0_104, %c1_105, %c0_106, %c0_107] : memref<1x8x8x288xf32, #tpu.memory_space<vmem>>, vector<1x7x1x32xf32>
    tpu.vector_store %arg14[%c0_104, %c1_105, %c0_106, %c0_107], %78 {strides = array<i32>} : memref<1x8x8x288xf32, #tpu.memory_space<vmem>>, vector<1x7x1x32xf32>,
    %80 = vector.extract_strided_slice %73 {offsets = [0, 0, 0, 0], sizes = [1, 7, 8, 32], strides = [1, 1, 1, 1]} : vector<1x8x8x32xf32> to vector<1x7x8x32xf32>
    %c0_108 = arith.constant 0 : index
    %c1_109 = arith.constant 1 : index
    %c0_110 = arith.constant 0 : index
    %c32_111 = arith.constant 32 : index
    %81 = vector.load %arg14[%c0_108, %c1_109, %c0_110, %c32_111] : memref<1x8x8x288xf32, #tpu.memory_space<vmem>>, vector<1x7x8x32xf32>
    tpu.vector_store %arg14[%c0_108, %c1_109, %c0_110, %c32_111], %80 {strides = array<i32>} : memref<1x8x8x288xf32, #tpu.memory_space<vmem>>, vector<1x7x8x32xf32>,
    %cst_112 = arith.constant 0.000000e+00 : f32
    %82 = vector.broadcast %cst_112 : f32 to vector<1x1x8x32xf32>
    %c0_113 = arith.constant 0 : index
    %c0_114 = arith.constant 0 : index
    %c0_115 = arith.constant 0 : index
    %c32_116 = arith.constant 32 : index
    %83 = vector.load %arg14[%c0_113, %c0_114, %c0_115, %c32_116] : memref<1x8x8x288xf32, #tpu.memory_space<vmem>>, vector<1x1x8x32xf32>
    tpu.vector_store %arg14[%c0_113, %c0_114, %c0_115, %c32_116], %82 {strides = array<i32>} : memref<1x8x8x288xf32, #tpu.memory_space<vmem>>, vector<1x1x8x32xf32>,
    %84 = vector.extract_strided_slice %73 {offsets = [0, 0, 1, 0], sizes = [1, 7, 7, 32], strides = [1, 1, 1, 1]} : vector<1x8x8x32xf32> to vector<1x7x7x32xf32>
    %c0_117 = arith.constant 0 : index
    %c1_118 = arith.constant 1 : index
    %c0_119 = arith.constant 0 : index
    %c64_120 = arith.constant 64 : index
    %85 = vector.load %arg14[%c0_117, %c1_118, %c0_119, %c64_120] : memref<1x8x8x288xf32, #tpu.memory_space<vmem>>, vector<1x7x7x32xf32>
    tpu.vector_store %arg14[%c0_117, %c1_118, %c0_119, %c64_120], %84 {strides = array<i32>} : memref<1x8x8x288xf32, #tpu.memory_space<vmem>>, vector<1x7x7x32xf32>,
    %cst_121 = arith.constant 0.000000e+00 : f32
    %86 = vector.broadcast %cst_121 : f32 to vector<1x1x8x32xf32>
    %c0_122 = arith.constant 0 : index
    %c0_123 = arith.constant 0 : index
    %c0_124 = arith.constant 0 : index
    %c64_125 = arith.constant 64 : index
    %87 = vector.load %arg14[%c0_122, %c0_123, %c0_124, %c64_125] : memref<1x8x8x288xf32, #tpu.memory_space<vmem>>, vector<1x1x8x32xf32>
    tpu.vector_store %arg14[%c0_122, %c0_123, %c0_124, %c64_125], %86 {strides = array<i32>} : memref<1x8x8x288xf32, #tpu.memory_space<vmem>>, vector<1x1x8x32xf32>,
    %cst_126 = arith.constant 0.000000e+00 : f32
    %88 = vector.broadcast %cst_126 : f32 to vector<1x7x1x32xf32>
    %c0_127 = arith.constant 0 : index
    %c1_128 = arith.constant 1 : index
    %c7 = arith.constant 7 : index
    %c64_129 = arith.constant 64 : index
    %89 = vector.load %arg14[%c0_127, %c1_128, %c7, %c64_129] : memref<1x8x8x288xf32, #tpu.memory_space<vmem>>, vector<1x7x1x32xf32>
    tpu.vector_store %arg14[%c0_127, %c1_128, %c7, %c64_129], %88 {strides = array<i32>} : memref<1x8x8x288xf32, #tpu.memory_space<vmem>>, vector<1x7x1x32xf32>,
    %90 = vector.extract_strided_slice %73 {offsets = [0, 0, 0, 0], sizes = [1, 8, 7, 32], strides = [1, 1, 1, 1]} : vector<1x8x8x32xf32> to vector<1x8x7x32xf32>
    %c0_130 = arith.constant 0 : index
    %c0_131 = arith.constant 0 : index
    %c1_132 = arith.constant 1 : index
    %c96_133 = arith.constant 96 : index
    %91 = vector.load %arg14[%c0_130, %c0_131, %c1_132, %c96_133] : memref<1x8x8x288xf32, #tpu.memory_space<vmem>>, vector<1x8x7x32xf32>
    tpu.vector_store %arg14[%c0_130, %c0_131, %c1_132, %c96_133], %90 {strides = array<i32>} : memref<1x8x8x288xf32, #tpu.memory_space<vmem>>, vector<1x8x7x32xf32>,
    %cst_134 = arith.constant 0.000000e+00 : f32
    %92 = vector.broadcast %cst_134 : f32 to vector<1x8x1x32xf32>
    %c0_135 = arith.constant 0 : index
    %c0_136 = arith.constant 0 : index
    %c0_137 = arith.constant 0 : index
    %c96_138 = arith.constant 96 : index
    %93 = vector.load %arg14[%c0_135, %c0_136, %c0_137, %c96_138] : memref<1x8x8x288xf32, #tpu.memory_space<vmem>>, vector<1x8x1x32xf32>
    tpu.vector_store %arg14[%c0_135, %c0_136, %c0_137, %c96_138], %92 {strides = array<i32>} : memref<1x8x8x288xf32, #tpu.memory_space<vmem>>, vector<1x8x1x32xf32>,
    %c0_139 = arith.constant 0 : index
    %c0_140 = arith.constant 0 : index
    %c0_141 = arith.constant 0 : index
    %c128_142 = arith.constant 128 : index
    %94 = vector.load %arg14[%c0_139, %c0_140, %c0_141, %c128_142] : memref<1x8x8x288xf32, #tpu.memory_space<vmem>>, vector<1x8x8x32xf32>
    tpu.vector_store %arg14[%c0_139, %c0_140, %c0_141, %c128_142], %73 {strides = array<i32>} : memref<1x8x8x288xf32, #tpu.memory_space<vmem>>, vector<1x8x8x32xf32>,
    %95 = vector.extract_strided_slice %73 {offsets = [0, 0, 1, 0], sizes = [1, 8, 7, 32], strides = [1, 1, 1, 1]} : vector<1x8x8x32xf32> to vector<1x8x7x32xf32>
    %c0_143 = arith.constant 0 : index
    %c0_144 = arith.constant 0 : index
    %c0_145 = arith.constant 0 : index
    %c160 = arith.constant 160 : index
    %96 = vector.load %arg14[%c0_143, %c0_144, %c0_145, %c160] : memref<1x8x8x288xf32, #tpu.memory_space<vmem>>, vector<1x8x7x32xf32>
    tpu.vector_store %arg14[%c0_143, %c0_144, %c0_145, %c160], %95 {strides = array<i32>} : memref<1x8x8x288xf32, #tpu.memory_space<vmem>>, vector<1x8x7x32xf32>,
    %cst_146 = arith.constant 0.000000e+00 : f32
    %97 = vector.broadcast %cst_146 : f32 to vector<1x8x1x32xf32>
    %c0_147 = arith.constant 0 : index
    %c0_148 = arith.constant 0 : index
    %c7_149 = arith.constant 7 : index
    %c160_150 = arith.constant 160 : index
    %98 = vector.load %arg14[%c0_147, %c0_148, %c7_149, %c160_150] : memref<1x8x8x288xf32, #tpu.memory_space<vmem>>, vector<1x8x1x32xf32>
    tpu.vector_store %arg14[%c0_147, %c0_148, %c7_149, %c160_150], %97 {strides = array<i32>} : memref<1x8x8x288xf32, #tpu.memory_space<vmem>>, vector<1x8x1x32xf32>,
    %99 = vector.extract_strided_slice %73 {offsets = [0, 1, 0, 0], sizes = [1, 7, 7, 32], strides = [1, 1, 1, 1]} : vector<1x8x8x32xf32> to vector<1x7x7x32xf32>
    %c0_151 = arith.constant 0 : index
    %c0_152 = arith.constant 0 : index
    %c1_153 = arith.constant 1 : index
    %c192 = arith.constant 192 : index
    %100 = vector.load %arg14[%c0_151, %c0_152, %c1_153, %c192] : memref<1x8x8x288xf32, #tpu.memory_space<vmem>>, vector<1x7x7x32xf32>
    tpu.vector_store %arg14[%c0_151, %c0_152, %c1_153, %c192], %99 {strides = array<i32>} : memref<1x8x8x288xf32, #tpu.memory_space<vmem>>, vector<1x7x7x32xf32>,
    %cst_154 = arith.constant 0.000000e+00 : f32
    %101 = vector.broadcast %cst_154 : f32 to vector<1x1x8x32xf32>
    %c0_155 = arith.constant 0 : index
    %c7_156 = arith.constant 7 : index
    %c0_157 = arith.constant 0 : index
    %c192_158 = arith.constant 192 : index
    %102 = vector.load %arg14[%c0_155, %c7_156, %c0_157, %c192_158] : memref<1x8x8x288xf32, #tpu.memory_space<vmem>>, vector<1x1x8x32xf32>
    tpu.vector_store %arg14[%c0_155, %c7_156, %c0_157, %c192_158], %101 {strides = array<i32>} : memref<1x8x8x288xf32, #tpu.memory_space<vmem>>, vector<1x1x8x32xf32>,
    %cst_159 = arith.constant 0.000000e+00 : f32
    %103 = vector.broadcast %cst_159 : f32 to vector<1x7x1x32xf32>
    %c0_160 = arith.constant 0 : index
    %c0_161 = arith.constant 0 : index
    %c0_162 = arith.constant 0 : index
    %c192_163 = arith.constant 192 : index
    %104 = vector.load %arg14[%c0_160, %c0_161, %c0_162, %c192_163] : memref<1x8x8x288xf32, #tpu.memory_space<vmem>>, vector<1x7x1x32xf32>
    tpu.vector_store %arg14[%c0_160, %c0_161, %c0_162, %c192_163], %103 {strides = array<i32>} : memref<1x8x8x288xf32, #tpu.memory_space<vmem>>, vector<1x7x1x32xf32>,
    %105 = vector.extract_strided_slice %73 {offsets = [0, 1, 0, 0], sizes = [1, 7, 8, 32], strides = [1, 1, 1, 1]} : vector<1x8x8x32xf32> to vector<1x7x8x32xf32>
    %c0_164 = arith.constant 0 : index
    %c0_165 = arith.constant 0 : index
    %c0_166 = arith.constant 0 : index
    %c224 = arith.constant 224 : index
    %106 = vector.load %arg14[%c0_164, %c0_165, %c0_166, %c224] : memref<1x8x8x288xf32, #tpu.memory_space<vmem>>, vector<1x7x8x32xf32>
    tpu.vector_store %arg14[%c0_164, %c0_165, %c0_166, %c224], %105 {strides = array<i32>} : memref<1x8x8x288xf32, #tpu.memory_space<vmem>>, vector<1x7x8x32xf32>,
    %cst_167 = arith.constant 0.000000e+00 : f32
    %107 = vector.broadcast %cst_167 : f32 to vector<1x1x8x32xf32>
    %c0_168 = arith.constant 0 : index
    %c7_169 = arith.constant 7 : index
    %c0_170 = arith.constant 0 : index
    %c224_171 = arith.constant 224 : index
    %108 = vector.load %arg14[%c0_168, %c7_169, %c0_170, %c224_171] : memref<1x8x8x288xf32, #tpu.memory_space<vmem>>, vector<1x1x8x32xf32>
    tpu.vector_store %arg14[%c0_168, %c7_169, %c0_170, %c224_171], %107 {strides = array<i32>} : memref<1x8x8x288xf32, #tpu.memory_space<vmem>>, vector<1x1x8x32xf32>,
    %109 = vector.extract_strided_slice %73 {offsets = [0, 1, 1, 0], sizes = [1, 7, 7, 32], strides = [1, 1, 1, 1]} : vector<1x8x8x32xf32> to vector<1x7x7x32xf32>
    %c0_172 = arith.constant 0 : index
    %c0_173 = arith.constant 0 : index
    %c0_174 = arith.constant 0 : index
    %c256 = arith.constant 256 : index
    %110 = vector.load %arg14[%c0_172, %c0_173, %c0_174, %c256] : memref<1x8x8x288xf32, #tpu.memory_space<vmem>>, vector<1x7x7x32xf32>
    tpu.vector_store %arg14[%c0_172, %c0_173, %c0_174, %c256], %109 {strides = array<i32>} : memref<1x8x8x288xf32, #tpu.memory_space<vmem>>, vector<1x7x7x32xf32>,
    %cst_175 = arith.constant 0.000000e+00 : f32
    %111 = vector.broadcast %cst_175 : f32 to vector<1x1x8x32xf32>
    %c0_176 = arith.constant 0 : index
    %c7_177 = arith.constant 7 : index
    %c0_178 = arith.constant 0 : index
    %c256_179 = arith.constant 256 : index
    %112 = vector.load %arg14[%c0_176, %c7_177, %c0_178, %c256_179] : memref<1x8x8x288xf32, #tpu.memory_space<vmem>>, vector<1x1x8x32xf32>
    tpu.vector_store %arg14[%c0_176, %c7_177, %c0_178, %c256_179], %111 {strides = array<i32>} : memref<1x8x8x288xf32, #tpu.memory_space<vmem>>, vector<1x1x8x32xf32>,
    %cst_180 = arith.constant 0.000000e+00 : f32
    %113 = vector.broadcast %cst_180 : f32 to vector<1x7x1x32xf32>
    %c0_181 = arith.constant 0 : index
    %c0_182 = arith.constant 0 : index
    %c7_183 = arith.constant 7 : index
    %c256_184 = arith.constant 256 : index
    %114 = vector.load %arg14[%c0_181, %c0_182, %c7_183, %c256_184] : memref<1x8x8x288xf32, #tpu.memory_space<vmem>>, vector<1x7x1x32xf32>
    tpu.vector_store %arg14[%c0_181, %c0_182, %c7_183, %c256_184], %113 {strides = array<i32>} : memref<1x8x8x288xf32, #tpu.memory_space<vmem>>, vector<1x7x1x32xf32>,
    %c0_185 = arith.constant 0 : index
    %c0_186 = arith.constant 0 : index
    %c0_187 = arith.constant 0 : index
    %c0_188 = arith.constant 0 : index
    %115 = vector.load %arg14[%c0_185, %c0_186, %c0_187, %c0_188] : memref<1x8x8x288xf32, #tpu.memory_space<vmem>>, vector<1x8x8x288xf32>
    %116 = vector.shape_cast %115 : vector<1x8x8x288xf32> to vector<64x288xf32>
    %c0_189 = arith.constant 0 : index
    %c0_190 = arith.constant 0 : index
    %117 = vector.load %arg10[%c0_189, %c0_190] : memref<288x32xf32, #tpu.memory_space<vmem>>, vector<288x32xf32>
    %cst_191 = arith.constant dense<0.000000e+00> : vector<64x32xf32>
    %118 = tpu.matmul %116, %117, %cst_191 {dimension_numbers = #tpu.dot_dimension_numbers<[1], [0], [0], [1], [0, 0, 1, 1], [], []>} : vector<64x288xf32>, vector<288x32xf32>, vector<64x32xf32> -> vector<64x32xf32>
    %119 = arith.addf %64, %118 : vector<64x32xf32>
    %120 = vector.shape_cast %119 : vector<64x32xf32> to vector<1x8x8x32xf32>
    %c0_192 = arith.constant 0 : index
    %c0_193 = arith.constant 0 : index
    %c0_194 = arith.constant 0 : index
    %c0_195 = arith.constant 0 : index
    %121 = vector.load %arg12[%c0_192, %c0_193, %c0_194, %c0_195] : memref<1x8x8x32xf32, #tpu.memory_space<vmem>>, vector<1x8x8x32xf32>
    tpu.vector_store %arg12[%c0_192, %c0_193, %c0_194, %c0_195], %120 {strides = array<i32>} : memref<1x8x8x32xf32, #tpu.memory_space<vmem>>, vector<1x8x8x32xf32>,
    return
  }
  func.func @transform_0(%arg0: i32) -> (i32, i32, i32, i32) {
    %c0_i32 = arith.constant 0 : i32
    %c0_i32_0 = arith.constant 0 : i32
    %c0_i32_1 = arith.constant 0 : i32
    %c0_i32_2 = arith.constant 0 : i32
    return %arg0, %c0_i32, %c0_i32_0, %c0_i32_1 : i32, i32, i32, i32
  }
  func.func @transform_1(%arg0: i32) -> (i32, i32, i32, i32) {
    %c0_i32 = arith.constant 0 : i32
    %c0_i32_0 = arith.constant 0 : i32
    %c0_i32_1 = arith.constant 0 : i32
    %c0_i32_2 = arith.constant 0 : i32
    return %arg0, %c0_i32, %c0_i32_0, %c0_i32_1 : i32, i32, i32, i32
  }
  func.func @transform_2(%arg0: i32) -> (i32, i32, i32, i32) {
    %c0_i32 = arith.constant 0 : i32
    %c0_i32_0 = arith.constant 0 : i32
    %c0_i32_1 = arith.constant 0 : i32
    %c0_i32_2 = arith.constant 0 : i32
    return %arg0, %c0_i32, %c0_i32_0, %c0_i32_1 : i32, i32, i32, i32
  }
  func.func @transform_3(%arg0: i32) -> (i32, i32, i32, i32) {
    %c0_i32 = arith.constant 0 : i32
    %c0_i32_0 = arith.constant 0 : i32
    %c0_i32_1 = arith.constant 0 : i32
    %c0_i32_2 = arith.constant 0 : i32
    return %arg0, %c0_i32, %c0_i32_0, %c0_i32_1 : i32, i32, i32, i32
  }
  func.func @transform_4(%arg0: i32) -> (i32, i32) {
    %c0_i32 = arith.constant 0 : i32
    %c0_i32_0 = arith.constant 0 : i32
    %c0_i32_1 = arith.constant 0 : i32
    return %c0_i32, %c0_i32_0 : i32, i32
  }
  func.func @transform_5(%arg0: i32) -> (i32, i32) {
    %c0_i32 = arith.constant 0 : i32
    %c0_i32_0 = arith.constant 0 : i32
    %c0_i32_1 = arith.constant 0 : i32
    return %c0_i32, %c0_i32_0 : i32, i32
  }
  func.func @transform_6(%arg0: i32) -> (i32, i32) {
    %c0_i32 = arith.constant 0 : i32
    %c0_i32_0 = arith.constant 0 : i32
    %c0_i32_1 = arith.constant 0 : i32
    return %c0_i32, %c0_i32_0 : i32, i32
  }
  func.func @transform_7(%arg0: i32) -> (i32, i32) {
    %c0_i32 = arith.constant 0 : i32
    %c0_i32_0 = arith.constant 0 : i32
    %c0_i32_1 = arith.constant 0 : i32
    return %c0_i32, %c0_i32_0 : i32, i32
  }
  func.func @transform_8(%arg0: i32) -> (i32, i32) {
    %c0_i32 = arith.constant 0 : i32
    %c0_i32_0 = arith.constant 0 : i32
    %c0_i32_1 = arith.constant 0 : i32
    return %c0_i32, %c0_i32_0 : i32, i32
  }
  func.func @transform_9(%arg0: i32) -> (i32, i32) {
    %c0_i32 = arith.constant 0 : i32
    %c0_i32_0 = arith.constant 0 : i32
    %c0_i32_1 = arith.constant 0 : i32
    return %c0_i32, %c0_i32_0 : i32, i32
  }
  func.func @transform_10(%arg0: i32) -> (i32, i32) {
    %c0_i32 = arith.constant 0 : i32
    %c0_i32_0 = arith.constant 0 : i32
    %c0_i32_1 = arith.constant 0 : i32
    return %c0_i32, %c0_i32_0 : i32, i32
  }
  func.func @transform_11(%arg0: i32) -> (i32, i32, i32, i32) {
    %c0_i32 = arith.constant 0 : i32
    %c0_i32_0 = arith.constant 0 : i32
    %c0_i32_1 = arith.constant 0 : i32
    %c0_i32_2 = arith.constant 0 : i32
    return %arg0, %c0_i32, %c0_i32_0, %c0_i32_1 : i32, i32, i32, i32
  }
}

</mosaic_0001>

<llo_original>
// kernel: tpu_custom_call.1
$region0: #{tpu_custom_call.1}
  #allocation0 [shape = 'u32[]', space=smem, size = 0x4, offset = 0x4, fixed_abs, tag = 'smem constant byte address 0x4 - core index']
  #allocation1 [shape = 'u32[144,128]{1,0:T(1,128)}', space=vmem, size = 0x12000, scoped, tag = 'internal scratch']
  #allocation2 [shape = 'f32[1,8,8,144]{3,2,1,0:T(8,128)}', space=vmem, size = 0x10000, scoped, tag = 'scratch operand']
  #allocation3 [shape = 'f32[1,8,8,288]{3,2,1,0:T(8,128)}', space=vmem, size = 0x18000, scoped, tag = 'scratch operand']
  %s0 = inlined_call_operand.vmem [shape: f32[2,8,8,16], index: 0, kind: input, shape index: {}]
  %s1 = inlined_call_operand.vmem [shape: f32[2,8,8,16], index: 1, kind: input, shape index: {}]
  %s2 = inlined_call_operand.vmem [shape: f32[2,8,8,16], index: 2, kind: input, shape index: {}]
  %s3 = inlined_call_operand.vmem [shape: f32[2,8,8,16], index: 3, kind: input, shape index: {}]
  %s4 = inlined_call_operand.vmem [shape: f32[1,16], index: 4, kind: input, shape index: {}]
  %s5 = inlined_call_operand.vmem [shape: f32[1,16], index: 5, kind: input, shape index: {}]
  %s6 = inlined_call_operand.vmem [shape: f32[1,32], index: 6, kind: input, shape index: {}]
  %s7 = inlined_call_operand.vmem [shape: f32[1,32], index: 7, kind: input, shape index: {}]
  %s8 = inlined_call_operand.vmem [shape: f32[144,32], index: 8, kind: input, shape index: {}]
  %s9 = inlined_call_operand.vmem [shape: f32[288,32], index: 9, kind: input, shape index: {}]
  %s10 = inlined_call_operand.vmem [shape: f32[16,32], index: 10, kind: input, shape index: {}]
  %s11 = inlined_call_operand.hbm [shape: f32[2,8,8,32], index: 11, kind: output, shape index: {}]
  %s12 = sld [smem:[#allocation0]]
  $region77: #{tpu_custom_call.1} parent=0
    _
  %s14 = ssub.s32 1, %s12
  %s15 = scalar_select 0, %s14, %s12
  $region1: #{tpu_custom_call.1} parent=0
    #allocation4 [shape = 'u8[65536]{0}', space=vmem, size = 0x10000, scoped, tag = 'output window, operand 0']
    #allocation5 [shape = 's32[2]{0}', space=sflag, size = 0x8, scoped, tag = 'scoped memory for tpu_custom_call.1']
    %16 = vsyncpa [#allocation5], 0
    %s17 = scalar_lea.sflag [#allocation5], 1
    %18 = vsyncpa %s17, 0
    loop: start=0, step=1, limit=4
    $region2: #{tpu_custom_call.1} parent=1 // loop_pre_header
      _
    $region3: #{tpu_custom_call.1} parent=1 // loop_header
      %s20 = sphi 0, %s24
      %p21 = scmp.ge.s32.totalorder %s20, 4
      %s30 = sphi 0, %s32
      %s33 = sphi 0, %s30
      %s34 = sphi 0, %s33
      %s50 = sphi 0, %s34
      %s56 = sphi 0, %s58
      %s59 = sphi 0, %s56
      %s60 = sphi 0, %s59
      %s76 = sphi 0, %s60
      %s82 = sphi 0, %s84
      %s85 = sphi 0, %s82
      %s86 = sphi 0, %s85
      %s102 = sphi 0, %s86
      %s108 = sphi 0, %s110
      %s111 = sphi 0, %s108
      %s112 = sphi 0, %s111
      %s128 = sphi 0, %s112
      %s132 = sphi 0, %s132
      %s134 = sphi 0, %s132
      %s135 = sphi 0, %s134
      %s149 = sphi 0, %s135
      %s153 = sphi 0, %s153
      %s155 = sphi 0, %s153
      %s156 = sphi 0, %s155
      %s170 = sphi 0, %s156
      %s174 = sphi 0, %s174
      %s176 = sphi 0, %s174
      %s177 = sphi 0, %s176
      %s191 = sphi 0, %s177
      %s195 = sphi 0, %s195
      %s197 = sphi 0, %s195
      %s198 = sphi 0, %s197
      %s212 = sphi 0, %s198
      %s216 = sphi 0, %s216
      %s218 = sphi 0, %s216
      %s219 = sphi 0, %s218
      %s233 = sphi 0, %s219
      %s237 = sphi 0, %s237
      %s239 = sphi 0, %s237
      %s240 = sphi 0, %s239
      %s254 = sphi 0, %s240
      %s258 = sphi 0, %s258
      %s260 = sphi 0, %s258
      %s261 = sphi 0, %s260
      %s275 = sphi 0, %s261
      %s281 = sphi 0, %s283
      %s284 = sphi 0, %s281
      %s285 = sphi 0, %s284
      %s301 = sphi 0, %s285
    $region4: #{tpu_custom_call.1} parent=1 // loop_header_branch
      %23 = sbr.rel (%p21) target = $region8
    $region5: #{tpu_custom_call.1} parent=1 // loop_body
      %s25 = ssub.s32 %s20, 1
      %s26 = ssub.s32 %s20, 2
      %s27 = sadd.s32 %s20, 1
      %s28 = ssub.s32 %s20, %s27
      %p29 = scmp.eq.s32.totalorder %s28, 0
      %s31 = sadd.s32 %s30, 1
      %s32 = scalar_select %p29, %s30, %s31
      %p35 = pneg %p29
      %p36 = scmp.eq.s32.totalorder %s20, 1
      %p37 = por %p35, %p36
      %p38 = scmp.ne.s32.totalorder %s30, %s33
      %p39 = scmp.eq.s32.totalorder %s20, 0
      %p40 = por %p38, %p39
      %p41 = scmp.ne.s32.totalorder %s30, %s33
      %p42 = scmp.eq.s32.totalorder %s25, 1
      %p43 = por %p41, %p42
      %p44 = scmp.ne.s32.totalorder %s33, %s34
      %p45 = scmp.eq.s32.totalorder %s25, 0
      %p46 = por %p44, %p45
      %p47 = scmp.ne.s32.totalorder %s33, %s34
      %p48 = scmp.eq.s32.totalorder %s26, 1
      %p49 = por %p47, %p48
      %p51 = scmp.ne.s32.totalorder %s34, %s50
      %p52 = scmp.eq.s32.totalorder %s26, 0
      %p53 = por %p51, %p52
      %s54 = ssub.s32 %s20, %s27
      %p55 = scmp.eq.s32.totalorder %s54, 0
      %s57 = sadd.s32 %s56, 1
      %s58 = scalar_select %p55, %s56, %s57
      %p61 = pneg %p55
      %p62 = scmp.eq.s32.totalorder %s20, 1
      %p63 = por %p61, %p62
      %p64 = scmp.ne.s32.totalorder %s56, %s59
      %p65 = scmp.eq.s32.totalorder %s20, 0
      %p66 = por %p64, %p65
      %p67 = scmp.ne.s32.totalorder %s56, %s59
      %p68 = scmp.eq.s32.totalorder %s25, 1
      %p69 = por %p67, %p68
      %p70 = scmp.ne.s32.totalorder %s59, %s60
      %p71 = scmp.eq.s32.totalorder %s25, 0
      %p72 = por %p70, %p71
      %p73 = scmp.ne.s32.totalorder %s59, %s60
      %p74 = scmp.eq.s32.totalorder %s26, 1
      %p75 = por %p73, %p74
      %p77 = scmp.ne.s32.totalorder %s60, %s76
      %p78 = scmp.eq.s32.totalorder %s26, 0
      %p79 = por %p77, %p78
      %s80 = ssub.s32 %s20, %s27
      %p81 = scmp.eq.s32.totalorder %s80, 0
      %s83 = sadd.s32 %s82, 1
      %s84 = scalar_select %p81, %s82, %s83
      %p87 = pneg %p81
      %p88 = scmp.eq.s32.totalorder %s20, 1
      %p89 = por %p87, %p88
      %p90 = scmp.ne.s32.totalorder %s82, %s85
      %p91 = scmp.eq.s32.totalorder %s20, 0
      %p92 = por %p90, %p91
      %p93 = scmp.ne.s32.totalorder %s82, %s85
      %p94 = scmp.eq.s32.totalorder %s25, 1
      %p95 = por %p93, %p94
      %p96 = scmp.ne.s32.totalorder %s85, %s86
      %p97 = scmp.eq.s32.totalorder %s25, 0
      %p98 = por %p96, %p97
      %p99 = scmp.ne.s32.totalorder %s85, %s86
      %p100 = scmp.eq.s32.totalorder %s26, 1
      %p101 = por %p99, %p100
      %p103 = scmp.ne.s32.totalorder %s86, %s102
      %p104 = scmp.eq.s32.totalorder %s26, 0
      %p105 = por %p103, %p104
      %s106 = ssub.s32 %s20, %s27
      %p107 = scmp.eq.s32.totalorder %s106, 0
      %s109 = sadd.s32 %s108, 1
      %s110 = scalar_select %p107, %s108, %s109
      %p113 = pneg %p107
      %p114 = scmp.eq.s32.totalorder %s20, 1
      %p115 = por %p113, %p114
      %p116 = scmp.ne.s32.totalorder %s108, %s111
      %p117 = scmp.eq.s32.totalorder %s20, 0
      %p118 = por %p116, %p117
      %p119 = scmp.ne.s32.totalorder %s108, %s111
      %p120 = scmp.eq.s32.totalorder %s25, 1
      %p121 = por %p119, %p120
      %p122 = scmp.ne.s32.totalorder %s111, %s112
      %p123 = scmp.eq.s32.totalorder %s25, 0
      %p124 = por %p122, %p123
      %p125 = scmp.ne.s32.totalorder %s111, %s112
      %p126 = scmp.eq.s32.totalorder %s26, 1
      %p127 = por %p125, %p126
      %p129 = scmp.ne.s32.totalorder %s112, %s128
      %p130 = scmp.eq.s32.totalorder %s26, 0
      %p131 = por %p129, %p130
      %s133 = sadd.s32 %s132, 1
      %p136 = scmp.eq.s32.totalorder %s20, 1
      %p137 = scmp.ne.s32.totalorder %s132, %s134
      %p138 = scmp.eq.s32.totalorder %s20, 0
      %p139 = por %p137, %p138
      %p140 = scmp.ne.s32.totalorder %s132, %s134
      %p141 = scmp.eq.s32.totalorder %s25, 1
      %p142 = por %p140, %p141
      %p143 = scmp.ne.s32.totalorder %s134, %s135
      %p144 = scmp.eq.s32.totalorder %s25, 0
      %p145 = por %p143, %p144
      %p146 = scmp.ne.s32.totalorder %s134, %s135
      %p147 = scmp.eq.s32.totalorder %s26, 1
      %p148 = por %p146, %p147
      %p150 = scmp.ne.s32.totalorder %s135, %s149
      %p151 = scmp.eq.s32.totalorder %s26, 0
      %p152 = por %p150, %p151
      %s154 = sadd.s32 %s153, 1
      %p157 = scmp.eq.s32.totalorder %s20, 1
      %p158 = scmp.ne.s32.totalorder %s153, %s155
      %p159 = scmp.eq.s32.totalorder %s20, 0
      %p160 = por %p158, %p159
      %p161 = scmp.ne.s32.totalorder %s153, %s155
      %p162 = scmp.eq.s32.totalorder %s25, 1
      %p163 = por %p161, %p162
      %p164 = scmp.ne.s32.totalorder %s155, %s156
      %p165 = scmp.eq.s32.totalorder %s25, 0
      %p166 = por %p164, %p165
      %p167 = scmp.ne.s32.totalorder %s155, %s156
      %p168 = scmp.eq.s32.totalorder %s26, 1
      %p169 = por %p167, %p168
      %p171 = scmp.ne.s32.totalorder %s156, %s170
      %p172 = scmp.eq.s32.totalorder %s26, 0
      %p173 = por %p171, %p172
      %s175 = sadd.s32 %s174, 1
      %p178 = scmp.eq.s32.totalorder %s20, 1
      %p179 = scmp.ne.s32.totalorder %s174, %s176
      %p180 = scmp.eq.s32.totalorder %s20, 0
      %p181 = por %p179, %p180
      %p182 = scmp.ne.s32.totalorder %s174, %s176
      %p183 = scmp.eq.s32.totalorder %s25, 1
      %p184 = por %p182, %p183
      %p185 = scmp.ne.s32.totalorder %s176, %s177
      %p186 = scmp.eq.s32.totalorder %s25, 0
      %p187 = por %p185, %p186
      %p188 = scmp.ne.s32.totalorder %s176, %s177
      %p189 = scmp.eq.s32.totalorder %s26, 1
      %p190 = por %p188, %p189
      %p192 = scmp.ne.s32.totalorder %s177, %s191
      %p193 = scmp.eq.s32.totalorder %s26, 0
      %p194 = por %p192, %p193
      %s196 = sadd.s32 %s195, 1
      %p199 = scmp.eq.s32.totalorder %s20, 1
      %p200 = scmp.ne.s32.totalorder %s195, %s197
      %p201 = scmp.eq.s32.totalorder %s20, 0
      %p202 = por %p200, %p201
      %p203 = scmp.ne.s32.totalorder %s195, %s197
      %p204 = scmp.eq.s32.totalorder %s25, 1
      %p205 = por %p203, %p204
      %p206 = scmp.ne.s32.totalorder %s197, %s198
      %p207 = scmp.eq.s32.totalorder %s25, 0
      %p208 = por %p206, %p207
      %p209 = scmp.ne.s32.totalorder %s197, %s198
      %p210 = scmp.eq.s32.totalorder %s26, 1
      %p211 = por %p209, %p210
      %p213 = scmp.ne.s32.totalorder %s198, %s212
      %p214 = scmp.eq.s32.totalorder %s26, 0
      %p215 = por %p213, %p214
      %s217 = sadd.s32 %s216, 1
      %p220 = scmp.eq.s32.totalorder %s20, 1
      %p221 = scmp.ne.s32.totalorder %s216, %s218
      %p222 = scmp.eq.s32.totalorder %s20, 0
      %p223 = por %p221, %p222
      %p224 = scmp.ne.s32.totalorder %s216, %s218
      %p225 = scmp.eq.s32.totalorder %s25, 1
      %p226 = por %p224, %p225
      %p227 = scmp.ne.s32.totalorder %s218, %s219
      %p228 = scmp.eq.s32.totalorder %s25, 0
      %p229 = por %p227, %p228
      %p230 = scmp.ne.s32.totalorder %s218, %s219
      %p231 = scmp.eq.s32.totalorder %s26, 1
      %p232 = por %p230, %p231
      %p234 = scmp.ne.s32.totalorder %s219, %s233
      %p235 = scmp.eq.s32.totalorder %s26, 0
      %p236 = por %p234, %p235
      %s238 = sadd.s32 %s237, 1
      %p241 = scmp.eq.s32.totalorder %s20, 1
      %p242 = scmp.ne.s32.totalorder %s237, %s239
      %p243 = scmp.eq.s32.totalorder %s20, 0
      %p244 = por %p242, %p243
      %p245 = scmp.ne.s32.totalorder %s237, %s239
      %p246 = scmp.eq.s32.totalorder %s25, 1
      %p247 = por %p245, %p246
      %p248 = scmp.ne.s32.totalorder %s239, %s240
      %p249 = scmp.eq.s32.totalorder %s25, 0
      %p250 = por %p248, %p249
      %p251 = scmp.ne.s32.totalorder %s239, %s240
      %p252 = scmp.eq.s32.totalorder %s26, 1
      %p253 = por %p251, %p252
      %p255 = scmp.ne.s32.totalorder %s240, %s254
      %p256 = scmp.eq.s32.totalorder %s26, 0
      %p257 = por %p255, %p256
      %s259 = sadd.s32 %s258, 1
      %p262 = scmp.eq.s32.totalorder %s20, 1
      %p263 = scmp.ne.s32.totalorder %s258, %s260
      %p264 = scmp.eq.s32.totalorder %s20, 0
      %p265 = por %p263, %p264
      %p266 = scmp.ne.s32.totalorder %s258, %s260
      %p267 = scmp.eq.s32.totalorder %s25, 1
      %p268 = por %p266, %p267
      %p269 = scmp.ne.s32.totalorder %s260, %s261
      %p270 = scmp.eq.s32.totalorder %s25, 0
      %p271 = por %p269, %p270
      %p272 = scmp.ne.s32.totalorder %s260, %s261
      %p273 = scmp.eq.s32.totalorder %s26, 1
      %p274 = por %p272, %p273
      %p276 = scmp.ne.s32.totalorder %s261, %s275
      %p277 = scmp.eq.s32.totalorder %s26, 0
      %p278 = por %p276, %p277
      %s279 = ssub.s32 %s20, %s27
      %p280 = scmp.eq.s32.totalorder %s279, 0
      %s282 = sadd.s32 %s281, 1
      %s283 = scalar_select %p280, %s281, %s282
      %p286 = pneg %p280
      %p287 = scmp.eq.s32.totalorder %s20, 1
      %p288 = por %p286, %p287
      %p289 = scmp.ne.s32.totalorder %s281, %s284
      %p290 = scmp.eq.s32.totalorder %s20, 0
      %p291 = por %p289, %p290
      %p292 = scmp.ne.s32.totalorder %s281, %s284
      %p293 = scmp.eq.s32.totalorder %s25, 1
      %p294 = por %p292, %p293
      %p295 = scmp.ne.s32.totalorder %s284, %s285
      %p296 = scmp.eq.s32.totalorder %s25, 0
      %p297 = por %p295, %p296
      %p298 = scmp.ne.s32.totalorder %s284, %s285
      %p299 = scmp.eq.s32.totalorder %s26, 1
      %p300 = por %p298, %p299
      %p302 = scmp.ne.s32.totalorder %s285, %s301
      %p303 = scmp.eq.s32.totalorder %s26, 0
      %p304 = por %p302, %p303
      %p305 = scmp.le.s32.totalorder 1, %s20
      %p306 = scmp.lt.s32.totalorder %s20, 3
      %p307 = pnand %p305, %p306
      %p308 = pneg %p307
      // Predicated region
      $region9: #{tpu_custom_call.1} parent=5 // pred_check
        _
      $region10: #{tpu_custom_call.1} parent=5 // pred_check_branch
        %310 = sbr.rel (%p307) target = $region12
      $region11: #{tpu_custom_call.1} parent=5 // pred_region
        %s311 = ssub.s32 %s20, 1
        // Predicated region
        $region13: #{tpu_custom_call.1} parent=11 // pred_check
          %p312 = pneg %p145
        $region14: #{tpu_custom_call.1} parent=11 // pred_check_branch
          %314 = sbr.rel (%p312) target = $region16
        $region15: #{tpu_custom_call.1} parent=11 // pred_region
          _
        $region16: #{tpu_custom_call.1} parent=11 // pred_fallthru
          _
        // Predicated region
        $region17: #{tpu_custom_call.1} parent=11 // pred_check
          %p315 = pneg %p166
        $region18: #{tpu_custom_call.1} parent=11 // pred_check_branch
          %317 = sbr.rel (%p315) target = $region20
        $region19: #{tpu_custom_call.1} parent=11 // pred_region
          _
        $region20: #{tpu_custom_call.1} parent=11 // pred_fallthru
          _
        // Predicated region
        $region21: #{tpu_custom_call.1} parent=11 // pred_check
          %p318 = pneg %p187
        $region22: #{tpu_custom_call.1} parent=11 // pred_check_branch
          %320 = sbr.rel (%p318) target = $region24
        $region23: #{tpu_custom_call.1} parent=11 // pred_region
          _
        $region24: #{tpu_custom_call.1} parent=11 // pred_fallthru
          _
        // Predicated region
        $region25: #{tpu_custom_call.1} parent=11 // pred_check
          %p321 = pneg %p208
        $region26: #{tpu_custom_call.1} parent=11 // pred_check_branch
          %323 = sbr.rel (%p321) target = $region28
        $region27: #{tpu_custom_call.1} parent=11 // pred_region
          _
        $region28: #{tpu_custom_call.1} parent=11 // pred_fallthru
          _
        // Predicated region
        $region29: #{tpu_custom_call.1} parent=11 // pred_check
          %p324 = pneg %p229
        $region30: #{tpu_custom_call.1} parent=11 // pred_check_branch
          %326 = sbr.rel (%p324) target = $region32
        $region31: #{tpu_custom_call.1} parent=11 // pred_region
          _
        $region32: #{tpu_custom_call.1} parent=11 // pred_fallthru
          _
        // Predicated region
        $region33: #{tpu_custom_call.1} parent=11 // pred_check
          %p327 = pneg %p250
        $region34: #{tpu_custom_call.1} parent=11 // pred_check_branch
          %329 = sbr.rel (%p327) target = $region36
        $region35: #{tpu_custom_call.1} parent=11 // pred_region
          _
        $region36: #{tpu_custom_call.1} parent=11 // pred_fallthru
          _
        // Predicated region
        $region37: #{tpu_custom_call.1} parent=11 // pred_check
          %p330 = pneg %p271
        $region38: #{tpu_custom_call.1} parent=11 // pred_check_branch
          %332 = sbr.rel (%p330) target = $region40
        $region39: #{tpu_custom_call.1} parent=11 // pred_region
          _
        $region40: #{tpu_custom_call.1} parent=11 // pred_fallthru
          _
      $region12: #{tpu_custom_call.1} parent=5 // pred_fallthru
        _
      %p333 = scmp.lt.s32.totalorder %s20, 2
      // Predicated region
      $region41: #{tpu_custom_call.1} parent=5 // pred_check
        %p334 = pneg %p333
      $region42: #{tpu_custom_call.1} parent=5 // pred_check_branch
        %336 = sbr.rel (%p334) target = $region44
      $region43: #{tpu_custom_call.1} parent=5 // pred_region
        // Predicated region
        $region45: #{tpu_custom_call.1} parent=43 // pred_check
          %p337 = pneg %p40
        $region46: #{tpu_custom_call.1} parent=43 // pred_check_branch
          %339 = sbr.rel (%p337) target = $region48
        $region47: #{tpu_custom_call.1} parent=43 // pred_region
          %p340 = scmp.lt.s32.totalorder %s20, 1
          %s341 = scalar_select %p340, %s20, 1
          %s342 = smul.addr %s341, 8
          %s343 = smul.addr %s342, 8
          %s344 = scalar_lea.vmem %s0, %s343
        $region48: #{tpu_custom_call.1} parent=43 // pred_fallthru
          _
        // Predicated region
        $region49: #{tpu_custom_call.1} parent=43 // pred_check
          %p345 = pneg %p66
        $region50: #{tpu_custom_call.1} parent=43 // pred_check_branch
          %347 = sbr.rel (%p345) target = $region52
        $region51: #{tpu_custom_call.1} parent=43 // pred_region
          %p348 = scmp.lt.s32.totalorder %s20, 1
          %s349 = scalar_select %p348, %s20, 1
          %s350 = smul.addr %s349, 8
          %s351 = smul.addr %s350, 8
          %s352 = scalar_lea.vmem %s1, %s351
        $region52: #{tpu_custom_call.1} parent=43 // pred_fallthru
          _
        // Predicated region
        $region53: #{tpu_custom_call.1} parent=43 // pred_check
          %p353 = pneg %p92
        $region54: #{tpu_custom_call.1} parent=43 // pred_check_branch
          %355 = sbr.rel (%p353) target = $region56
        $region55: #{tpu_custom_call.1} parent=43 // pred_region
          %p356 = scmp.lt.s32.totalorder %s20, 1
          %s357 = scalar_select %p356, %s20, 1
          %s358 = smul.addr %s357, 8
          %s359 = smul.addr %s358, 8
          %s360 = scalar_lea.vmem %s2, %s359
        $region56: #{tpu_custom_call.1} parent=43 // pred_fallthru
          _
        // Predicated region
        $region57: #{tpu_custom_call.1} parent=43 // pred_check
          %p361 = pneg %p118
        $region58: #{tpu_custom_call.1} parent=43 // pred_check_branch
          %363 = sbr.rel (%p361) target = $region60
        $region59: #{tpu_custom_call.1} parent=43 // pred_region
          %p364 = scmp.lt.s32.totalorder %s20, 1
          %s365 = scalar_select %p364, %s20, 1
          %s366 = smul.addr %s365, 8
          %s367 = smul.addr %s366, 8
          %s368 = scalar_lea.vmem %s3, %s367
        $region60: #{tpu_custom_call.1} parent=43 // pred_fallthru
          _
      $region44: #{tpu_custom_call.1} parent=5 // pred_fallthru
        _
      %p369 = scmp.le.s32.totalorder 1, %s20
      %p370 = scmp.lt.s32.totalorder %s20, 3
      %p371 = pnand %p369, %p370
      %p372 = pneg %p371
      // Predicated region
      $region61: #{tpu_custom_call.1} parent=5 // pred_check
        _
      $region62: #{tpu_custom_call.1} parent=5 // pred_check_branch
        %374 = sbr.rel (%p371) target = $region64
      $region63: #{tpu_custom_call.1} parent=5 // pred_region
        %s375 = ssub.s32 %s20, 1
        %p376 = scmp.lt.s32.totalorder %s25, 1
        %s377 = scalar_select %p376, %s25, 1
        %s378 = smul.addr %s377, 8
        %s379 = smul.addr %s378, 8
        %s380 = scalar_lea.vmem %s0, %s379
        %p381 = pneg %p46
        %p382 = pneg %p43
        %p383 = scmp.lt.s32.totalorder %s25, 1
        %s384 = scalar_select %p383, %s25, 1
        %s385 = smul.addr %s384, 8
        %s386 = smul.addr %s385, 8
        %s387 = scalar_lea.vmem %s1, %s386
        %p388 = pneg %p72
        %p389 = pneg %p69
        %p390 = scmp.lt.s32.totalorder %s25, 1
        %s391 = scalar_select %p390, %s25, 1
        %s392 = smul.addr %s391, 8
        %s393 = smul.addr %s392, 8
        %s394 = scalar_lea.vmem %s2, %s393
        %p395 = pneg %p98
        %p396 = pneg %p95
        %p397 = scmp.lt.s32.totalorder %s25, 1
        %s398 = scalar_select %p397, %s25, 1
        %s399 = smul.addr %s398, 8
        %s400 = smul.addr %s399, 8
        %s401 = scalar_lea.vmem %s3, %s400
        %p402 = pneg %p124
        %p403 = pneg %p121
        %p404 = pneg %p145
        %p405 = pneg %p142
        %p406 = pneg %p166
        %p407 = pneg %p163
        %p408 = pneg %p187
        %p409 = pneg %p184
        %p410 = pneg %p208
        %p411 = pneg %p205
        %p412 = pneg %p229
        %p413 = pneg %p226
        %p414 = pneg %p250
        %p415 = pneg %p247
        %p416 = pneg %p271
        %p417 = pneg %p268
        %p418 = pneg %p297
        %p419 = pneg %p294
        %s420 = sand.u32 %s284, 1
        %s421 = scalar_lea.sflag [#allocation5], %s420
        %s422 = sand.u32 %s284, 1
        %s423 = smul.addr %s422, 64
        %s424 = scalar_lea.vmem [#allocation4], %s423
        %p425 = scmp.lt.s32.totalorder %s25, 1
        %s426 = scalar_select %p425, %s25, 1
        %s427 = smul.addr %s426, 8
        %s428 = smul.addr %s427, 8
        %s429 = scalar_lea.vmem %s0, %s428
        %p430 = scmp.lt.s32.totalorder %s25, 1
        %s431 = scalar_select %p430, %s25, 1
        %s432 = smul.addr %s431, 8
        %s433 = smul.addr %s432, 8
        %s434 = scalar_lea.vmem %s1, %s433
        %p435 = scmp.lt.s32.totalorder %s25, 1
        %s436 = scalar_select %p435, %s25, 1
        %s437 = smul.addr %s436, 8
        %s438 = smul.addr %s437, 8
        %s439 = scalar_lea.vmem %s2, %s438
        %p440 = scmp.lt.s32.totalorder %s25, 1
        %s441 = scalar_select %p440, %s25, 1
        %s442 = smul.addr %s441, 8
        %s443 = smul.addr %s442, 8
        %s444 = scalar_lea.vmem %s3, %s443
        %v445 = vld [vmem:[%s4] sm:$0x1]
        %v446 = vld [vmem:[%s5] sm:$0x1]
        %v447 = vld [vmem:[%s429] sm:$0xff]
        %v448 = vld [vmem:[%s429 + $0x8] sm:$0xff]
        %v449 = vld [vmem:[%s429 + $0x10] sm:$0xff]
        %v450 = vld [vmem:[%s429 + $0x18] sm:$0xff]
        %v451 = vld [vmem:[%s429 + $0x20] sm:$0xff]
        %v452 = vld [vmem:[%s429 + $0x28] sm:$0xff]
        %v453 = vld [vmem:[%s429 + $0x30] sm:$0xff]
        %v454 = vld [vmem:[%s429 + $0x38] sm:$0xff]
        %v456 = vlaneseq
        %v457 = vshrl.u32 %v456, 7
        %v458 = vsub.s32 0, %v457
        %v459 = vrot.slane %v445, %v458
        %v461 = vmul.f32 %v447, %v459
        %v462 = vmul.f32 %v448, %v459
        %v463 = vmul.f32 %v449, %v459
        %v464 = vmul.f32 %v450, %v459
        %v465 = vmul.f32 %v451, %v459
        %v466 = vmul.f32 %v452, %v459
        %v467 = vmul.f32 %v453, %v459
        %v468 = vmul.f32 %v454, %v459
        %v470 = vlaneseq
        %v471 = vshrl.u32 %v470, 7
        %v472 = vsub.s32 0, %v471
        %v473 = vrot.slane %v446, %v472
        %v475 = vadd.f32 %v461, %v473
        %v476 = vadd.f32 %v462, %v473
        %v477 = vadd.f32 %v463, %v473
        %v478 = vadd.f32 %v464, %v473
        %v479 = vadd.f32 %v465, %v473
        %v480 = vadd.f32 %v466, %v473
        %v481 = vadd.f32 %v467, %v473
        %v482 = vadd.f32 %v468, %v473
        %v483 = vmax.f32 %v475, 0.0
        %v484 = vmax.f32 %v476, 0.0
        %v485 = vmax.f32 %v477, 0.0
        %v486 = vmax.f32 %v478, 0.0
        %v487 = vmax.f32 %v479, 0.0
        %v488 = vmax.f32 %v480, 0.0
        %v489 = vmax.f32 %v481, 0.0
        %v490 = vmax.f32 %v482, 0.0
        %v491 = vld [vmem:[%s434] sm:$0xff]
        %v492 = vld [vmem:[%s434 + $0x8] sm:$0xff]
        %v493 = vld [vmem:[%s434 + $0x10] sm:$0xff]
        %v494 = vld [vmem:[%s434 + $0x18] sm:$0xff]
        %v495 = vld [vmem:[%s434 + $0x20] sm:$0xff]
        %v496 = vld [vmem:[%s434 + $0x28] sm:$0xff]
        %v497 = vld [vmem:[%s434 + $0x30] sm:$0xff]
        %v498 = vld [vmem:[%s434 + $0x38] sm:$0xff]
        %v499 = vmul.f32 %v491, %v459
        %v500 = vmul.f32 %v492, %v459
        %v501 = vmul.f32 %v493, %v459
        %v502 = vmul.f32 %v494, %v459
        %v503 = vmul.f32 %v495, %v459
        %v504 = vmul.f32 %v496, %v459
        %v505 = vmul.f32 %v497, %v459
        %v506 = vmul.f32 %v498, %v459
        %v507 = vadd.f32 %v499, %v473
        %v508 = vadd.f32 %v500, %v473
        %v509 = vadd.f32 %v501, %v473
        %v510 = vadd.f32 %v502, %v473
        %v511 = vadd.f32 %v503, %v473
        %v512 = vadd.f32 %v504, %v473
        %v513 = vadd.f32 %v505, %v473
        %v514 = vadd.f32 %v506, %v473
        %v515 = vmax.f32 %v507, 0.0
        %v516 = vmax.f32 %v508, 0.0
        %v517 = vmax.f32 %v509, 0.0
        %v518 = vmax.f32 %v510, 0.0
        %v519 = vmax.f32 %v511, 0.0
        %v520 = vmax.f32 %v512, 0.0
        %v521 = vmax.f32 %v513, 0.0
        %v522 = vmax.f32 %v514, 0.0
        %v523 = vld [vmem:[%s439] sm:$0xff]
        %v524 = vld [vmem:[%s439 + $0x8] sm:$0xff]
        %v525 = vld [vmem:[%s439 + $0x10] sm:$0xff]
        %v526 = vld [vmem:[%s439 + $0x18] sm:$0xff]
        %v527 = vld [vmem:[%s439 + $0x20] sm:$0xff]
        %v528 = vld [vmem:[%s439 + $0x28] sm:$0xff]
        %v529 = vld [vmem:[%s439 + $0x30] sm:$0xff]
        %v530 = vld [vmem:[%s439 + $0x38] sm:$0xff]
        %v531 = vmul.f32 %v523, %v459
        %v532 = vmul.f32 %v524, %v459
        %v533 = vmul.f32 %v525, %v459
        %v534 = vmul.f32 %v526, %v459
        %v535 = vmul.f32 %v527, %v459
        %v536 = vmul.f32 %v528, %v459
        %v537 = vmul.f32 %v529, %v459
        %v538 = vmul.f32 %v530, %v459
        %v539 = vadd.f32 %v531, %v473
        %v540 = vadd.f32 %v532, %v473
        %v541 = vadd.f32 %v533, %v473
        %v542 = vadd.f32 %v534, %v473
        %v543 = vadd.f32 %v535, %v473
        %v544 = vadd.f32 %v536, %v473
        %v545 = vadd.f32 %v537, %v473
        %v546 = vadd.f32 %v538, %v473
        %v547 = vmax.f32 %v539, 0.0
        %v548 = vmax.f32 %v540, 0.0
        %v549 = vmax.f32 %v541, 0.0
        %v550 = vmax.f32 %v542, 0.0
        %v551 = vmax.f32 %v543, 0.0
        %v552 = vmax.f32 %v544, 0.0
        %v553 = vmax.f32 %v545, 0.0
        %v554 = vmax.f32 %v546, 0.0
        %v555 = vld [vmem:[%s444] sm:$0xff]
        %v556 = vld [vmem:[%s444 + $0x8] sm:$0xff]
        %v557 = vld [vmem:[%s444 + $0x10] sm:$0xff]
        %v558 = vld [vmem:[%s444 + $0x18] sm:$0xff]
        %v559 = vld [vmem:[%s444 + $0x20] sm:$0xff]
        %v560 = vld [vmem:[%s444 + $0x28] sm:$0xff]
        %v561 = vld [vmem:[%s444 + $0x30] sm:$0xff]
        %v562 = vld [vmem:[%s444 + $0x38] sm:$0xff]
        %v563 = vmul.f32 %v555, %v459
        %v564 = vmul.f32 %v556, %v459
        %v565 = vmul.f32 %v557, %v459
        %v566 = vmul.f32 %v558, %v459
        %v567 = vmul.f32 %v559, %v459
        %v568 = vmul.f32 %v560, %v459
        %v569 = vmul.f32 %v561, %v459
        %v570 = vmul.f32 %v562, %v459
        %v571 = vadd.f32 %v563, %v473
        %v572 = vadd.f32 %v564, %v473
        %v573 = vadd.f32 %v565, %v473
        %v574 = vadd.f32 %v566, %v473
        %v575 = vadd.f32 %v567, %v473
        %v576 = vadd.f32 %v568, %v473
        %v577 = vadd.f32 %v569, %v473
        %v578 = vadd.f32 %v570, %v473
        %v579 = vmax.f32 %v571, 0.0
        %v580 = vmax.f32 %v572, 0.0
        %v581 = vmax.f32 %v573, 0.0
        %v582 = vmax.f32 %v574, 0.0
        %v583 = vmax.f32 %v575, 0.0
        %v584 = vmax.f32 %v576, 0.0
        %v585 = vmax.f32 %v577, 0.0
        %v586 = vmax.f32 %v578, 0.0
        %v594 = vrot.slane %v579, 7
        %v595 = vrot.slane %v580, 7
        %v596 = vrot.slane %v581, 7
        %v597 = vrot.slane %v582, 7
        %v598 = vrot.slane %v583, 7
        %v599 = vrot.slane %v584, 7
        %v600 = vrot.slane %v585, 7
        %s608 = scalar_lea.vmem [#allocation2], 16
        %vm609 = vcmask 130049
        %610 = vst.msk [vmem:[%s608] sm:$0xfe] %vm609, %v594
        %611 = vst.msk [vmem:[%s608 + $0x10] sm:$0xfe] %vm609, %v595
        %612 = vst.msk [vmem:[%s608 + $0x20] sm:$0xfe] %vm609, %v596
        %613 = vst.msk [vmem:[%s608 + $0x30] sm:$0xfe] %vm609, %v597
        %614 = vst.msk [vmem:[%s608 + $0x40] sm:$0xfe] %vm609, %v598
        %615 = vst.msk [vmem:[%s608 + $0x50] sm:$0xfe] %vm609, %v599
        %616 = vst.msk [vmem:[%s608 + $0x60] sm:$0xfe] %vm609, %v600
        %vm617 = vcmask 130048
        %618 = vst.msk [vmem:[#allocation2] sm:$0xff] %vm617, 0.0
        %vm619 = vcmask 122880
        %620 = vst.msk [vmem:[%s608] sm:$0x1] %vm619, 0.0
        %621 = vst.msk [vmem:[%s608 + $0x10] sm:$0x1] %vm619, 0.0
        %622 = vst.msk [vmem:[%s608 + $0x20] sm:$0x1] %vm619, 0.0
        %623 = vst.msk [vmem:[%s608 + $0x30] sm:$0x1] %vm619, 0.0
        %624 = vst.msk [vmem:[%s608 + $0x40] sm:$0x1] %vm619, 0.0
        %625 = vst.msk [vmem:[%s608 + $0x50] sm:$0x1] %vm619, 0.0
        %626 = vst.msk [vmem:[%s608 + $0x60] sm:$0x1] %vm619, 0.0
        %634 = vrot.lane.b32.xlu0 %v547, 16
        %v635 = vpop.permute.xlu0 %634
        %636 = vrot.lane.b32.xlu0 %v548, 16
        %v637 = vpop.permute.xlu0 %636
        %638 = vrot.lane.b32.xlu0 %v549, 16
        %v639 = vpop.permute.xlu0 %638
        %640 = vrot.lane.b32.xlu0 %v550, 16
        %v641 = vpop.permute.xlu0 %640
        %642 = vrot.lane.b32.xlu0 %v551, 16
        %v643 = vpop.permute.xlu0 %642
        %644 = vrot.lane.b32.xlu0 %v552, 16
        %v645 = vpop.permute.xlu0 %644
        %646 = vrot.lane.b32.xlu0 %v553, 16
        %v647 = vpop.permute.xlu0 %646
        %vm655 = vcmask 261248
        %656 = vst.msk [vmem:[%s608] sm:$0xff] %vm655, %v635
        %657 = vst.msk [vmem:[%s608 + $0x10] sm:$0xff] %vm655, %v637
        %658 = vst.msk [vmem:[%s608 + $0x20] sm:$0xff] %vm655, %v639
        %659 = vst.msk [vmem:[%s608 + $0x30] sm:$0xff] %vm655, %v641
        %660 = vst.msk [vmem:[%s608 + $0x40] sm:$0xff] %vm655, %v643
        %661 = vst.msk [vmem:[%s608 + $0x50] sm:$0xff] %vm655, %v645
        %662 = vst.msk [vmem:[%s608 + $0x60] sm:$0xff] %vm655, %v647
        %663 = vst.msk [vmem:[#allocation2] sm:$0xff] %vm655, 0.0
        %664 = vrot.lane.b32.xlu0 %v579, 32
        %v665 = vpop.permute.xlu0 %664
        %666 = vrot.lane.b32.xlu0 %v580, 32
        %v667 = vpop.permute.xlu0 %666
        %668 = vrot.lane.b32.xlu0 %v581, 32
        %v669 = vpop.permute.xlu0 %668
        %670 = vrot.lane.b32.xlu0 %v582, 32
        %v671 = vpop.permute.xlu0 %670
        %672 = vrot.lane.b32.xlu0 %v583, 32
        %v673 = vpop.permute.xlu0 %672
        %674 = vrot.lane.b32.xlu0 %v584, 32
        %v675 = vpop.permute.xlu0 %674
        %676 = vrot.lane.b32.xlu0 %v585, 32
        %v677 = vpop.permute.xlu0 %676
        %vm685 = vcmask 392448
        %686 = vst.msk [vmem:[%s608] sm:$0xff] %vm685, %v665
        %687 = vst.msk [vmem:[%s608 + $0x10] sm:$0xff] %vm685, %v667
        %688 = vst.msk [vmem:[%s608 + $0x20] sm:$0xff] %vm685, %v669
        %689 = vst.msk [vmem:[%s608 + $0x30] sm:$0xff] %vm685, %v671
        %690 = vst.msk [vmem:[%s608 + $0x40] sm:$0xff] %vm685, %v673
        %691 = vst.msk [vmem:[%s608 + $0x50] sm:$0xff] %vm685, %v675
        %692 = vst.msk [vmem:[%s608 + $0x60] sm:$0xff] %vm685, %v677
        %693 = vst.msk [vmem:[#allocation2] sm:$0xff] %vm685, 0.0
        %v702 = vrot.slane %v515, 7
        %v703 = vrot.slane %v516, 7
        %v704 = vrot.slane %v517, 7
        %v705 = vrot.slane %v518, 7
        %v706 = vrot.slane %v519, 7
        %v707 = vrot.slane %v520, 7
        %v708 = vrot.slane %v521, 7
        %v709 = vrot.slane %v522, 7
        %710 = vrot.lane.b32.xlu0 %v702, 48
        %v711 = vpop.permute.xlu0 %710
        %712 = vrot.lane.b32.xlu0 %v703, 48
        %v713 = vpop.permute.xlu0 %712
        %714 = vrot.lane.b32.xlu0 %v704, 48
        %v715 = vpop.permute.xlu0 %714
        %716 = vrot.lane.b32.xlu0 %v705, 48
        %v717 = vpop.permute.xlu0 %716
        %718 = vrot.lane.b32.xlu0 %v706, 48
        %v719 = vpop.permute.xlu0 %718
        %720 = vrot.lane.b32.xlu0 %v707, 48
        %v721 = vpop.permute.xlu0 %720
        %722 = vrot.lane.b32.xlu0 %v708, 48
        %v723 = vpop.permute.xlu0 %722
        %724 = vrot.lane.b32.xlu0 %v709, 48
        %v725 = vpop.permute.xlu0 %724
        %vm734 = vcmask 523649
        %735 = vst.msk [vmem:[#allocation2] sm:$0xfe] %vm734, %v711
        %736 = vst.msk [vmem:[#allocation2 + $0x10] sm:$0xfe] %vm734, %v713
        %737 = vst.msk [vmem:[#allocation2 + $0x20] sm:$0xfe] %vm734, %v715
        %738 = vst.msk [vmem:[#allocation2 + $0x30] sm:$0xfe] %vm734, %v717
        %739 = vst.msk [vmem:[#allocation2 + $0x40] sm:$0xfe] %vm734, %v719
        %740 = vst.msk [vmem:[#allocation2 + $0x50] sm:$0xfe] %vm734, %v721
        %741 = vst.msk [vmem:[#allocation2 + $0x60] sm:$0xfe] %vm734, %v723
        %742 = vst.msk [vmem:[#allocation2 + $0x70] sm:$0xfe] %vm734, %v725
        %vm743 = vcmask 516480
        %744 = vst.msk [vmem:[#allocation2] sm:$0x1] %vm743, 0.0
        %745 = vst.msk [vmem:[#allocation2 + $0x10] sm:$0x1] %vm743, 0.0
        %746 = vst.msk [vmem:[#allocation2 + $0x20] sm:$0x1] %vm743, 0.0
        %747 = vst.msk [vmem:[#allocation2 + $0x30] sm:$0x1] %vm743, 0.0
        %748 = vst.msk [vmem:[#allocation2 + $0x40] sm:$0x1] %vm743, 0.0
        %749 = vst.msk [vmem:[#allocation2 + $0x50] sm:$0x1] %vm743, 0.0
        %750 = vst.msk [vmem:[#allocation2 + $0x60] sm:$0x1] %vm743, 0.0
        %751 = vst.msk [vmem:[#allocation2 + $0x70] sm:$0x1] %vm743, 0.0
        %760 = vrot.lane.b32.xlu0 %v483, 64
        %v761 = vpop.permute.xlu0 %760
        %762 = vrot.lane.b32.xlu0 %v484, 64
        %v763 = vpop.permute.xlu0 %762
        %764 = vrot.lane.b32.xlu0 %v485, 64
        %v765 = vpop.permute.xlu0 %764
        %766 = vrot.lane.b32.xlu0 %v486, 64
        %v767 = vpop.permute.xlu0 %766
        %768 = vrot.lane.b32.xlu0 %v487, 64
        %v769 = vpop.permute.xlu0 %768
        %770 = vrot.lane.b32.xlu0 %v488, 64
        %v771 = vpop.permute.xlu0 %770
        %772 = vrot.lane.b32.xlu0 %v489, 64
        %v773 = vpop.permute.xlu0 %772
        %774 = vrot.lane.b32.xlu0 %v490, 64
        %v775 = vpop.permute.xlu0 %774
        %vm784 = vcmask 654848
        %785 = vst.msk [vmem:[#allocation2] sm:$0xff] %vm784, %v761
        %786 = vst.msk [vmem:[#allocation2 + $0x10] sm:$0xff] %vm784, %v763
        %787 = vst.msk [vmem:[#allocation2 + $0x20] sm:$0xff] %vm784, %v765
        %788 = vst.msk [vmem:[#allocation2 + $0x30] sm:$0xff] %vm784, %v767
        %789 = vst.msk [vmem:[#allocation2 + $0x40] sm:$0xff] %vm784, %v769
        %790 = vst.msk [vmem:[#allocation2 + $0x50] sm:$0xff] %vm784, %v771
        %791 = vst.msk [vmem:[#allocation2 + $0x60] sm:$0xff] %vm784, %v773
        %792 = vst.msk [vmem:[#allocation2 + $0x70] sm:$0xff] %vm784, %v775
        %793 = vrot.lane.b32.xlu0 %v515, 80
        %v794 = vpop.permute.xlu0 %793
        %795 = vrot.lane.b32.xlu0 %v516, 80
        %v796 = vpop.permute.xlu0 %795
        %797 = vrot.lane.b32.xlu0 %v517, 80
        %v798 = vpop.permute.xlu0 %797
        %799 = vrot.lane.b32.xlu0 %v518, 80
        %v800 = vpop.permute.xlu0 %799
        %801 = vrot.lane.b32.xlu0 %v519, 80
        %v802 = vpop.permute.xlu0 %801
        %803 = vrot.lane.b32.xlu0 %v520, 80
        %v804 = vpop.permute.xlu0 %803
        %805 = vrot.lane.b32.xlu0 %v521, 80
        %v806 = vpop.permute.xlu0 %805
        %807 = vrot.lane.b32.xlu0 %v522, 80
        %v808 = vpop.permute.xlu0 %807
        %vm817 = vcmask 786048
        %818 = vst.msk [vmem:[#allocation2] sm:$0xff] %vm817, %v794
        %819 = vst.msk [vmem:[#allocation2 + $0x10] sm:$0xff] %vm817, %v796
        %820 = vst.msk [vmem:[#allocation2 + $0x20] sm:$0xff] %vm817, %v798
        %821 = vst.msk [vmem:[#allocation2 + $0x30] sm:$0xff] %vm817, %v800
        %822 = vst.msk [vmem:[#allocation2 + $0x40] sm:$0xff] %vm817, %v802
        %823 = vst.msk [vmem:[#allocation2 + $0x50] sm:$0xff] %vm817, %v804
        %824 = vst.msk [vmem:[#allocation2 + $0x60] sm:$0xff] %vm817, %v806
        %825 = vst.msk [vmem:[#allocation2 + $0x70] sm:$0xff] %vm817, %v808
        %v827 = vrot.slane %v586, 7
        %828 = vrot.lane.b32.xlu0 %v594, 96
        %v829 = vpop.permute.xlu0 %828
        %830 = vrot.lane.b32.xlu0 %v595, 96
        %v831 = vpop.permute.xlu0 %830
        %832 = vrot.lane.b32.xlu0 %v596, 96
        %v833 = vpop.permute.xlu0 %832
        %834 = vrot.lane.b32.xlu0 %v597, 96
        %v835 = vpop.permute.xlu0 %834
        %836 = vrot.lane.b32.xlu0 %v598, 96
        %v837 = vpop.permute.xlu0 %836
        %838 = vrot.lane.b32.xlu0 %v599, 96
        %v839 = vpop.permute.xlu0 %838
        %840 = vrot.lane.b32.xlu0 %v600, 96
        %v841 = vpop.permute.xlu0 %840
        %842 = vrot.lane.b32.xlu0 %v827, 96
        %v843 = vpop.permute.xlu0 %842
        %vm852 = vcmask 917249
        %853 = vst.msk [vmem:[#allocation2] sm:$0xfe] %vm852, %v829
        %854 = vst.msk [vmem:[#allocation2 + $0x10] sm:$0xfe] %vm852, %v831
        %855 = vst.msk [vmem:[#allocation2 + $0x20] sm:$0xfe] %vm852, %v833
        %856 = vst.msk [vmem:[#allocation2 + $0x30] sm:$0xfe] %vm852, %v835
        %857 = vst.msk [vmem:[#allocation2 + $0x40] sm:$0xfe] %vm852, %v837
        %858 = vst.msk [vmem:[#allocation2 + $0x50] sm:$0xfe] %vm852, %v839
        %859 = vst.msk [vmem:[#allocation2 + $0x60] sm:$0xfe] %vm852, %v841
        %860 = vst.msk [vmem:[#allocation2 + $0x70] sm:$0xfe] %vm852, %v843
        %vm861 = vcmask 910080
        %862 = vst.msk [vmem:[#allocation2] sm:$0x1] %vm861, 0.0
        %863 = vst.msk [vmem:[#allocation2 + $0x10] sm:$0x1] %vm861, 0.0
        %864 = vst.msk [vmem:[#allocation2 + $0x20] sm:$0x1] %vm861, 0.0
        %865 = vst.msk [vmem:[#allocation2 + $0x30] sm:$0x1] %vm861, 0.0
        %866 = vst.msk [vmem:[#allocation2 + $0x40] sm:$0x1] %vm861, 0.0
        %867 = vst.msk [vmem:[#allocation2 + $0x50] sm:$0x1] %vm861, 0.0
        %868 = vst.msk [vmem:[#allocation2 + $0x60] sm:$0x1] %vm861, 0.0
        %869 = vst.msk [vmem:[#allocation2 + $0x70] sm:$0x1] %vm861, 0.0
        %871 = vrot.lane.b32.xlu0 %v547, 112
        %v872 = vpop.permute.xlu0 %871
        %873 = vrot.lane.b32.xlu0 %v548, 112
        %v874 = vpop.permute.xlu0 %873
        %875 = vrot.lane.b32.xlu0 %v549, 112
        %v876 = vpop.permute.xlu0 %875
        %877 = vrot.lane.b32.xlu0 %v550, 112
        %v878 = vpop.permute.xlu0 %877
        %879 = vrot.lane.b32.xlu0 %v551, 112
        %v880 = vpop.permute.xlu0 %879
        %881 = vrot.lane.b32.xlu0 %v552, 112
        %v882 = vpop.permute.xlu0 %881
        %883 = vrot.lane.b32.xlu0 %v553, 112
        %v884 = vpop.permute.xlu0 %883
        %885 = vrot.lane.b32.xlu0 %v554, 112
        %v886 = vpop.permute.xlu0 %885
        %vm895 = vcmask 1048448
        %896 = vst.msk [vmem:[#allocation2] sm:$0xff] %vm895, %v872
        %897 = vst.msk [vmem:[#allocation2 + $0x10] sm:$0xff] %vm895, %v874
        %898 = vst.msk [vmem:[#allocation2 + $0x20] sm:$0xff] %vm895, %v876
        %899 = vst.msk [vmem:[#allocation2 + $0x30] sm:$0xff] %vm895, %v878
        %900 = vst.msk [vmem:[#allocation2 + $0x40] sm:$0xff] %vm895, %v880
        %901 = vst.msk [vmem:[#allocation2 + $0x50] sm:$0xff] %vm895, %v882
        %902 = vst.msk [vmem:[#allocation2 + $0x60] sm:$0xff] %vm895, %v884
        %903 = vst.msk [vmem:[#allocation2 + $0x70] sm:$0xff] %vm895, %v886
        %904 = vst.msk [vmem:[#allocation2 + $0x8] sm:$0xff] %vm617, %v579
        %905 = vst.msk [vmem:[#allocation2 + $0x18] sm:$0xff] %vm617, %v580
        %906 = vst.msk [vmem:[#allocation2 + $0x28] sm:$0xff] %vm617, %v581
        %907 = vst.msk [vmem:[#allocation2 + $0x38] sm:$0xff] %vm617, %v582
        %908 = vst.msk [vmem:[#allocation2 + $0x48] sm:$0xff] %vm617, %v583
        %909 = vst.msk [vmem:[#allocation2 + $0x58] sm:$0xff] %vm617, %v584
        %910 = vst.msk [vmem:[#allocation2 + $0x68] sm:$0xff] %vm617, %v585
        %911 = vst.msk [vmem:[#allocation2 + $0x78] sm:$0xff] %vm617, %v586
        %v912 = vld [vmem:[#allocation2] sm:$0xff]
        %v913 = vld [vmem:[#allocation2 + $0x8] sm:$0xff]
        %v914 = vld [vmem:[#allocation2 + $0x10] sm:$0xff]
        %v915 = vld [vmem:[#allocation2 + $0x18] sm:$0xff]
        %v916 = vld [vmem:[#allocation2 + $0x20] sm:$0xff]
        %v917 = vld [vmem:[#allocation2 + $0x28] sm:$0xff]
        %v918 = vld [vmem:[#allocation2 + $0x30] sm:$0xff]
        %v919 = vld [vmem:[#allocation2 + $0x38] sm:$0xff]
        %v920 = vld [vmem:[#allocation2 + $0x40] sm:$0xff]
        %v921 = vld [vmem:[#allocation2 + $0x48] sm:$0xff]
        %v922 = vld [vmem:[#allocation2 + $0x50] sm:$0xff]
        %v923 = vld [vmem:[#allocation2 + $0x58] sm:$0xff]
        %v924 = vld [vmem:[#allocation2 + $0x60] sm:$0xff]
        %v925 = vld [vmem:[#allocation2 + $0x68] sm:$0xff]
        %v926 = vld [vmem:[#allocation2 + $0x70] sm:$0xff]
        %v927 = vld [vmem:[#allocation2 + $0x78] sm:$0xff]
        %v928 = vld [vmem:[%s8] sm:$0xff]
        %v929 = vld [vmem:[%s8 + $0x8] sm:$0xff]
        %v930 = vld [vmem:[%s8 + $0x10] sm:$0xff]
        %v931 = vld [vmem:[%s8 + $0x18] sm:$0xff]
        %v932 = vld [vmem:[%s8 + $0x20] sm:$0xff]
        %v933 = vld [vmem:[%s8 + $0x28] sm:$0xff]
        %v934 = vld [vmem:[%s8 + $0x30] sm:$0xff]
        %v935 = vld [vmem:[%s8 + $0x38] sm:$0xff]
        %v936 = vld [vmem:[%s8 + $0x40] sm:$0xff]
        %v937 = vld [vmem:[%s8 + $0x48] sm:$0xff]
        %v938 = vld [vmem:[%s8 + $0x50] sm:$0xff]
        %v939 = vld [vmem:[%s8 + $0x58] sm:$0xff]
        %v940 = vld [vmem:[%s8 + $0x60] sm:$0xff]
        %v941 = vld [vmem:[%s8 + $0x68] sm:$0xff]
        %v942 = vld [vmem:[%s8 + $0x70] sm:$0xff]
        %v943 = vld [vmem:[%s8 + $0x78] sm:$0xff]
        %v944 = vld [vmem:[%s8 + $0x80] sm:$0xff]
        %v945 = vld [vmem:[%s8 + $0x88] sm:$0xff]
        %v947 = vsel %vm617, %v913, 0
        %v950 = vsel %vm617, %v915, 0
        %v953 = vsel %vm617, %v917, 0
        %v956 = vsel %vm617, %v919, 0
        %v959 = vsel %vm617, %v921, 0
        %v962 = vsel %vm617, %v923, 0
        %v965 = vsel %vm617, %v925, 0
        %v968 = vsel %vm617, %v927, 0
        %970 = vmatprep.subr.mxu0 0.0
        %971 = vmatpush1.msra.mxu0 %v943
        %972 = vmatprep.subr.mxu0 0.0
        %973 = vmatpush1.msra.mxu0 %v942
        %974 = vmatprep.subr.mxu0 0.0
        %975 = vmatpush1.msra.mxu0 %v941
        %976 = vmatprep.subr.mxu0 0.0
        %977 = vmatpush1.msra.mxu0 %v940
        %978 = vmatprep.subr.mxu0 0.0
        %979 = vmatpush1.msra.mxu0 %v939
        %980 = vmatprep.subr.mxu0 0.0
        %981 = vmatpush1.msra.mxu0 %v938
        %982 = vmatprep.subr.mxu0 0.0
        %983 = vmatpush1.msra.mxu0 %v937
        %984 = vmatprep.subr.mxu0 0.0
        %985 = vmatpush1.msra.mxu0 %v936
        %986 = vmatprep.subr.mxu0 0.0
        %987 = vmatpush1.msra.mxu0 %v935
        %988 = vmatprep.subr.mxu0 0.0
        %989 = vmatpush1.msra.mxu0 %v934
        %990 = vmatprep.subr.mxu0 0.0
        %991 = vmatpush1.msra.mxu0 %v933
        %992 = vmatprep.subr.mxu0 0.0
        %993 = vmatpush1.msra.mxu0 %v932
        %994 = vmatprep.subr.mxu0 0.0
        %995 = vmatpush1.msra.mxu0 %v931
        %996 = vmatprep.subr.mxu0 0.0
        %997 = vmatpush1.msra.mxu0 %v930
        %998 = vmatprep.subr.mxu0 0.0
        %999 = vmatpush1.msra.mxu0 %v929
        %1000 = vmatprep.subr.mxu0 0.0
        %1001 = vmatpush1.msra.mxu0 %v928
        %1002 = vmatprep.subr.mxu0 0.0
        %1003 = vmatpush2.msra.mxu0 0.0
        %1004 = vmatprep.subr.mxu0 0.0
        %1005 = vmatpush2.msra.mxu0 0.0
        %1006 = vmatprep.subr.mxu0 0.0
        %1007 = vmatpush2.msra.mxu0 0.0
        %1008 = vmatprep.subr.mxu0 0.0
        %1009 = vmatpush2.msra.mxu0 0.0
        %1010 = vmatprep.subr.mxu0 0.0
        %1011 = vmatpush2.msra.mxu0 0.0
        %1012 = vmatprep.subr.mxu0 0.0
        %1013 = vmatpush2.msra.mxu0 0.0
        %1014 = vmatprep.subr.mxu0 0.0
        %1015 = vmatpush2.msra.mxu0 0.0
        %1016 = vmatprep.subr.mxu0 0.0
        %1017 = vmatpush2.msra.mxu0 0.0
        %1018 = vmatprep.subr.mxu0 0.0
        %1019 = vmatpush2.msra.mxu0 0.0
        %1020 = vmatprep.subr.mxu0 0.0
        %1021 = vmatpush2.msra.mxu0 0.0
        %1022 = vmatprep.subr.mxu0 0.0
        %1023 = vmatpush2.msra.mxu0 0.0
        %1024 = vmatprep.subr.mxu0 0.0
        %1025 = vmatpush2.msra.mxu0 0.0
        %1026 = vmatprep.subr.mxu0 0.0
        %1027 = vmatpush2.msra.mxu0 0.0
        %1028 = vmatprep.subr.mxu0 0.0
        %1029 = vmatpush2.msra.mxu0 0.0
        %1030 = vmatprep.subr.mxu0 0.0
        %1031 = vmatpush2.msra.mxu0 %v945
        %1032 = vmatprep.subr.mxu0 0.0
        %1033 = vmatpush2.msra.mxu0 %v944
        %1034 = vmatprep.mubr.f32.mxu0 %v947
        %1035 = vmatmul.mubr.f32.gmra.mxu0 %v912
        %v1036 = vpop.f32.mrf.mxu0
        %v1037 = vadd.f32 0.0, %v1036
        %v1038 = vpop.f32.mrf.mxu0
        %1039 = vmatprep.mubr.f32.mxu0 %v950
        %1040 = vmatmul.mubr.f32.gmra.mxu0 %v914
        %v1041 = vpop.f32.mrf.mxu0
        %v1042 = vadd.f32 0.0, %v1041
        %v1043 = vpop.f32.mrf.mxu0
        %1044 = vmatprep.mubr.f32.mxu0 %v953
        %1045 = vmatmul.mubr.f32.gmra.mxu0 %v916
        %v1046 = vpop.f32.mrf.mxu0
        %v1047 = vadd.f32 0.0, %v1046
        %v1048 = vpop.f32.mrf.mxu0
        %1049 = vmatprep.mubr.f32.mxu0 %v956
        %1050 = vmatmul.mubr.f32.gmra.mxu0 %v918
        %v1051 = vpop.f32.mrf.mxu0
        %v1052 = vadd.f32 0.0, %v1051
        %v1053 = vpop.f32.mrf.mxu0
        %1054 = vmatprep.mubr.f32.mxu0 %v959
        %1055 = vmatmul.mubr.f32.gmra.mxu0 %v920
        %v1056 = vpop.f32.mrf.mxu0
        %v1057 = vadd.f32 0.0, %v1056
        %v1058 = vpop.f32.mrf.mxu0
        %1059 = vmatprep.mubr.f32.mxu0 %v962
        %1060 = vmatmul.mubr.f32.gmra.mxu0 %v922
        %v1061 = vpop.f32.mrf.mxu0
        %v1062 = vadd.f32 0.0, %v1061
        %v1063 = vpop.f32.mrf.mxu0
        %1064 = vmatprep.mubr.f32.mxu0 %v965
        %1065 = vmatmul.mubr.f32.gmra.mxu0 %v924
        %v1066 = vpop.f32.mrf.mxu0
        %v1067 = vadd.f32 0.0, %v1066
        %v1068 = vpop.f32.mrf.mxu0
        %1069 = vmatprep.mubr.f32.mxu0 %v968
        %1070 = vmatmul.mubr.f32.gmra.mxu0 %v926
        %v1071 = vpop.f32.mrf.mxu0
        %v1072 = vadd.f32 0.0, %v1071
        %v1073 = vpop.f32.mrf.mxu0
        %1074 = vdwg.mxu0
        %v1075 = vld [vmem:[%s10] sm:$0xff]
        %v1076 = vld [vmem:[%s10 + $0x8] sm:$0xff]
        %v1077 = vld [vmem:[%s6] sm:$0x1]
        %v1079 = vlaneseq
        %v1080 = vshrl.u32 %v1079, 7
        %v1081 = vsub.s32 0, %v1080
        %v1082 = vrot.slane %v1077, %v1081
        %v1084 = vmul.f32 %v1037, %v1082
        %v1085 = vmul.f32 %v1042, %v1082
        %v1086 = vmul.f32 %v1047, %v1082
        %v1087 = vmul.f32 %v1052, %v1082
        %v1088 = vmul.f32 %v1057, %v1082
        %v1089 = vmul.f32 %v1062, %v1082
        %v1090 = vmul.f32 %v1067, %v1082
        %v1091 = vmul.f32 %v1072, %v1082
        %v1092 = vld [vmem:[%s7] sm:$0x1]
        %v1094 = vlaneseq
        %v1095 = vshrl.u32 %v1094, 7
        %v1096 = vsub.s32 0, %v1095
        %v1097 = vrot.slane %v1092, %v1096
        %v1099 = vadd.f32 %v1084, %v1097
        %v1100 = vadd.f32 %v1085, %v1097
        %v1101 = vadd.f32 %v1086, %v1097
        %v1102 = vadd.f32 %v1087, %v1097
        %v1103 = vadd.f32 %v1088, %v1097
        %v1104 = vadd.f32 %v1089, %v1097
        %v1105 = vadd.f32 %v1090, %v1097
        %v1106 = vadd.f32 %v1091, %v1097
        %v1107 = vmax.f32 %v1099, 0.0
        %v1108 = vmax.f32 %v1100, 0.0
        %v1109 = vmax.f32 %v1101, 0.0
        %v1110 = vmax.f32 %v1102, 0.0
        %v1111 = vmax.f32 %v1103, 0.0
        %v1112 = vmax.f32 %v1104, 0.0
        %v1113 = vmax.f32 %v1105, 0.0
        %v1114 = vmax.f32 %v1106, 0.0
        %v1122 = vrot.slane %v1107, 7
        %v1123 = vrot.slane %v1108, 7
        %v1124 = vrot.slane %v1109, 7
        %v1125 = vrot.slane %v1110, 7
        %v1126 = vrot.slane %v1111, 7
        %v1127 = vrot.slane %v1112, 7
        %v1128 = vrot.slane %v1113, 7
        %s1136 = scalar_lea.vmem [#allocation3], 24
        %vm1137 = vcmask 261121
        %1138 = vst.msk [vmem:[%s1136] sm:$0xfe] %vm1137, %v1122
        %1139 = vst.msk [vmem:[%s1136 + $0x18] sm:$0xfe] %vm1137, %v1123
        %1140 = vst.msk [vmem:[%s1136 + $0x30] sm:$0xfe] %vm1137, %v1124
        %1141 = vst.msk [vmem:[%s1136 + $0x48] sm:$0xfe] %vm1137, %v1125
        %1142 = vst.msk [vmem:[%s1136 + $0x60] sm:$0xfe] %vm1137, %v1126
        %1143 = vst.msk [vmem:[%s1136 + $0x78] sm:$0xfe] %vm1137, %v1127
        %1144 = vst.msk [vmem:[%s1136 + $0x90] sm:$0xfe] %vm1137, %v1128
        %vm1145 = vcmask 261120
        %1146 = vst.msk [vmem:[#allocation3] sm:$0xff] %vm1145, 0.0
        %vm1147 = vcmask 253952
        %1148 = vst.msk [vmem:[%s1136] sm:$0x1] %vm1147, 0.0
        %1149 = vst.msk [vmem:[%s1136 + $0x18] sm:$0x1] %vm1147, 0.0
        %1150 = vst.msk [vmem:[%s1136 + $0x30] sm:$0x1] %vm1147, 0.0
        %1151 = vst.msk [vmem:[%s1136 + $0x48] sm:$0x1] %vm1147, 0.0
        %1152 = vst.msk [vmem:[%s1136 + $0x60] sm:$0x1] %vm1147, 0.0
        %1153 = vst.msk [vmem:[%s1136 + $0x78] sm:$0x1] %vm1147, 0.0
        %1154 = vst.msk [vmem:[%s1136 + $0x90] sm:$0x1] %vm1147, 0.0
        %1155 = vrot.lane.b32.xlu0 %v1107, 32
        %v1156 = vpop.permute.xlu0 %1155
        %1157 = vrot.lane.b32.xlu0 %v1108, 32
        %v1158 = vpop.permute.xlu0 %1157
        %1159 = vrot.lane.b32.xlu0 %v1109, 32
        %v1160 = vpop.permute.xlu0 %1159
        %1161 = vrot.lane.b32.xlu0 %v1110, 32
        %v1162 = vpop.permute.xlu0 %1161
        %1163 = vrot.lane.b32.xlu0 %v1111, 32
        %v1164 = vpop.permute.xlu0 %1163
        %1165 = vrot.lane.b32.xlu0 %v1112, 32
        %v1166 = vpop.permute.xlu0 %1165
        %1167 = vrot.lane.b32.xlu0 %v1113, 32
        %v1168 = vpop.permute.xlu0 %1167
        %vm1176 = vcmask 523520
        %1177 = vst.msk [vmem:[%s1136] sm:$0xff] %vm1176, %v1156
        %1178 = vst.msk [vmem:[%s1136 + $0x18] sm:$0xff] %vm1176, %v1158
        %1179 = vst.msk [vmem:[%s1136 + $0x30] sm:$0xff] %vm1176, %v1160
        %1180 = vst.msk [vmem:[%s1136 + $0x48] sm:$0xff] %vm1176, %v1162
        %1181 = vst.msk [vmem:[%s1136 + $0x60] sm:$0xff] %vm1176, %v1164
        %1182 = vst.msk [vmem:[%s1136 + $0x78] sm:$0xff] %vm1176, %v1166
        %1183 = vst.msk [vmem:[%s1136 + $0x90] sm:$0xff] %vm1176, %v1168
        %1184 = vst.msk [vmem:[#allocation3] sm:$0xff] %vm1176, 0.0
        %v1185 = vrot.slane %v1107, 1
        %v1186 = vrot.slane %v1108, 1
        %v1187 = vrot.slane %v1109, 1
        %v1188 = vrot.slane %v1110, 1
        %v1189 = vrot.slane %v1111, 1
        %v1190 = vrot.slane %v1112, 1
        %v1191 = vrot.slane %v1113, 1
        %1192 = vrot.lane.b32.xlu0 %v1185, 64
        %v1193 = vpop.permute.xlu0 %1192
        %1194 = vrot.lane.b32.xlu0 %v1186, 64
        %v1195 = vpop.permute.xlu0 %1194
        %1196 = vrot.lane.b32.xlu0 %v1187, 64
        %v1197 = vpop.permute.xlu0 %1196
        %1198 = vrot.lane.b32.xlu0 %v1188, 64
        %v1199 = vpop.permute.xlu0 %1198
        %1200 = vrot.lane.b32.xlu0 %v1189, 64
        %v1201 = vpop.permute.xlu0 %1200
        %1202 = vrot.lane.b32.xlu0 %v1190, 64
        %v1203 = vpop.permute.xlu0 %1202
        %1204 = vrot.lane.b32.xlu0 %v1191, 64
        %v1205 = vpop.permute.xlu0 %1204
        %vm1213 = vcmask 784896
        %1214 = vst.msk [vmem:[%s1136] sm:$0x7f] %vm1213, %v1193
        %1215 = vst.msk [vmem:[%s1136 + $0x18] sm:$0x7f] %vm1213, %v1195
        %1216 = vst.msk [vmem:[%s1136 + $0x30] sm:$0x7f] %vm1213, %v1197
        %1217 = vst.msk [vmem:[%s1136 + $0x48] sm:$0x7f] %vm1213, %v1199
        %1218 = vst.msk [vmem:[%s1136 + $0x60] sm:$0x7f] %vm1213, %v1201
        %1219 = vst.msk [vmem:[%s1136 + $0x78] sm:$0x7f] %vm1213, %v1203
        %1220 = vst.msk [vmem:[%s1136 + $0x90] sm:$0x7f] %vm1213, %v1205
        %vm1221 = vcmask 785920
        %1222 = vst.msk [vmem:[#allocation3] sm:$0xff] %vm1221, 0.0
        %vm1223 = vcmask 778752
        %1224 = vst.msk [vmem:[%s1136 + $0x7] sm:$0x1] %vm1223, 0.0
        %1225 = vst.msk [vmem:[%s1136 + $0x1f] sm:$0x1] %vm1223, 0.0
        %1226 = vst.msk [vmem:[%s1136 + $0x37] sm:$0x1] %vm1223, 0.0
        %1227 = vst.msk [vmem:[%s1136 + $0x4f] sm:$0x1] %vm1223, 0.0
        %1228 = vst.msk [vmem:[%s1136 + $0x67] sm:$0x1] %vm1223, 0.0
        %1229 = vst.msk [vmem:[%s1136 + $0x7f] sm:$0x1] %vm1223, 0.0
        %1230 = vst.msk [vmem:[%s1136 + $0x97] sm:$0x1] %vm1223, 0.0
        %v1232 = vrot.slane %v1114, 7
        %1233 = vrot.lane.b32.xlu0 %v1122, 96
        %v1234 = vpop.permute.xlu0 %1233
        %1235 = vrot.lane.b32.xlu0 %v1123, 96
        %v1236 = vpop.permute.xlu0 %1235
        %1237 = vrot.lane.b32.xlu0 %v1124, 96
        %v1238 = vpop.permute.xlu0 %1237
        %1239 = vrot.lane.b32.xlu0 %v1125, 96
        %v1240 = vpop.permute.xlu0 %1239
        %1241 = vrot.lane.b32.xlu0 %v1126, 96
        %v1242 = vpop.permute.xlu0 %1241
        %1243 = vrot.lane.b32.xlu0 %v1127, 96
        %v1244 = vpop.permute.xlu0 %1243
        %1245 = vrot.lane.b32.xlu0 %v1128, 96
        %v1246 = vpop.permute.xlu0 %1245
        %1247 = vrot.lane.b32.xlu0 %v1232, 96
        %v1248 = vpop.permute.xlu0 %1247
        %vm1257 = vcmask 1048321
        %1258 = vst.msk [vmem:[#allocation3] sm:$0xfe] %vm1257, %v1234
        %1259 = vst.msk [vmem:[#allocation3 + $0x18] sm:$0xfe] %vm1257, %v1236
        %1260 = vst.msk [vmem:[#allocation3 + $0x30] sm:$0xfe] %vm1257, %v1238
        %1261 = vst.msk [vmem:[#allocation3 + $0x48] sm:$0xfe] %vm1257, %v1240
        %1262 = vst.msk [vmem:[#allocation3 + $0x60] sm:$0xfe] %vm1257, %v1242
        %1263 = vst.msk [vmem:[#allocation3 + $0x78] sm:$0xfe] %vm1257, %v1244
        %1264 = vst.msk [vmem:[#allocation3 + $0x90] sm:$0xfe] %vm1257, %v1246
        %1265 = vst.msk [vmem:[#allocation3 + $0xa8] sm:$0xfe] %vm1257, %v1248
        %vm1266 = vcmask 1041152
        %1267 = vst.msk [vmem:[#allocation3] sm:$0x1] %vm1266, 0.0
        %1268 = vst.msk [vmem:[#allocation3 + $0x18] sm:$0x1] %vm1266, 0.0
        %1269 = vst.msk [vmem:[#allocation3 + $0x30] sm:$0x1] %vm1266, 0.0
        %1270 = vst.msk [vmem:[#allocation3 + $0x48] sm:$0x1] %vm1266, 0.0
        %1271 = vst.msk [vmem:[#allocation3 + $0x60] sm:$0x1] %vm1266, 0.0
        %1272 = vst.msk [vmem:[#allocation3 + $0x78] sm:$0x1] %vm1266, 0.0
        %1273 = vst.msk [vmem:[#allocation3 + $0x90] sm:$0x1] %vm1266, 0.0
        %1274 = vst.msk [vmem:[#allocation3 + $0xa8] sm:$0x1] %vm1266, 0.0
        %1275 = vst.msk [vmem:[#allocation3 + $0x8] sm:$0xff] %vm1145, %v1107
        %1276 = vst.msk [vmem:[#allocation3 + $0x20] sm:$0xff] %vm1145, %v1108
        %1277 = vst.msk [vmem:[#allocation3 + $0x38] sm:$0xff] %vm1145, %v1109
        %1278 = vst.msk [vmem:[#allocation3 + $0x50] sm:$0xff] %vm1145, %v1110
        %1279 = vst.msk [vmem:[#allocation3 + $0x68] sm:$0xff] %vm1145, %v1111
        %1280 = vst.msk [vmem:[#allocation3 + $0x80] sm:$0xff] %vm1145, %v1112
        %1281 = vst.msk [vmem:[#allocation3 + $0x98] sm:$0xff] %vm1145, %v1113
        %1282 = vst.msk [vmem:[#allocation3 + $0xb0] sm:$0xff] %vm1145, %v1114
        %v1283 = vrot.slane %v1114, 1
        %1284 = vrot.lane.b32.xlu0 %v1185, 32
        %v1285 = vpop.permute.xlu0 %1284
        %1286 = vrot.lane.b32.xlu0 %v1186, 32
        %v1287 = vpop.permute.xlu0 %1286
        %1288 = vrot.lane.b32.xlu0 %v1187, 32
        %v1289 = vpop.permute.xlu0 %1288
        %1290 = vrot.lane.b32.xlu0 %v1188, 32
        %v1291 = vpop.permute.xlu0 %1290
        %1292 = vrot.lane.b32.xlu0 %v1189, 32
        %v1293 = vpop.permute.xlu0 %1292
        %1294 = vrot.lane.b32.xlu0 %v1190, 32
        %v1295 = vpop.permute.xlu0 %1294
        %1296 = vrot.lane.b32.xlu0 %v1191, 32
        %v1297 = vpop.permute.xlu0 %1296
        %1298 = vrot.lane.b32.xlu0 %v1283, 32
        %v1299 = vpop.permute.xlu0 %1298
        %vm1308 = vcmask 522496
        %1309 = vst.msk [vmem:[#allocation3 + $0x8] sm:$0x7f] %vm1308, %v1285
        %1310 = vst.msk [vmem:[#allocation3 + $0x20] sm:$0x7f] %vm1308, %v1287
        %1311 = vst.msk [vmem:[#allocation3 + $0x38] sm:$0x7f] %vm1308, %v1289
        %1312 = vst.msk [vmem:[#allocation3 + $0x50] sm:$0x7f] %vm1308, %v1291
        %1313 = vst.msk [vmem:[#allocation3 + $0x68] sm:$0x7f] %vm1308, %v1293
        %1314 = vst.msk [vmem:[#allocation3 + $0x80] sm:$0x7f] %vm1308, %v1295
        %1315 = vst.msk [vmem:[#allocation3 + $0x98] sm:$0x7f] %vm1308, %v1297
        %1316 = vst.msk [vmem:[#allocation3 + $0xb0] sm:$0x7f] %vm1308, %v1299
        %vm1317 = vcmask 516352
        %1318 = vst.msk [vmem:[#allocation3 + $0xf] sm:$0x1] %vm1317, 0.0
        %1319 = vst.msk [vmem:[#allocation3 + $0x27] sm:$0x1] %vm1317, 0.0
        %1320 = vst.msk [vmem:[#allocation3 + $0x3f] sm:$0x1] %vm1317, 0.0
        %1321 = vst.msk [vmem:[#allocation3 + $0x57] sm:$0x1] %vm1317, 0.0
        %1322 = vst.msk [vmem:[#allocation3 + $0x6f] sm:$0x1] %vm1317, 0.0
        %1323 = vst.msk [vmem:[#allocation3 + $0x87] sm:$0x1] %vm1317, 0.0
        %1324 = vst.msk [vmem:[#allocation3 + $0x9f] sm:$0x1] %vm1317, 0.0
        %1325 = vst.msk [vmem:[#allocation3 + $0xb7] sm:$0x1] %vm1317, 0.0
        %1326 = vrot.lane.b32.xlu0 %v1123, 64
        %v1327 = vpop.permute.xlu0 %1326
        %1328 = vrot.lane.b32.xlu0 %v1124, 64
        %v1329 = vpop.permute.xlu0 %1328
        %1330 = vrot.lane.b32.xlu0 %v1125, 64
        %v1331 = vpop.permute.xlu0 %1330
        %1332 = vrot.lane.b32.xlu0 %v1126, 64
        %v1333 = vpop.permute.xlu0 %1332
        %1334 = vrot.lane.b32.xlu0 %v1127, 64
        %v1335 = vpop.permute.xlu0 %1334
        %1336 = vrot.lane.b32.xlu0 %v1128, 64
        %v1337 = vpop.permute.xlu0 %1336
        %1338 = vrot.lane.b32.xlu0 %v1232, 64
        %v1339 = vpop.permute.xlu0 %1338
        %vm1347 = vcmask 785921
        %1348 = vst.msk [vmem:[#allocation3 + $0x8] sm:$0xfe] %vm1347, %v1327
        %1349 = vst.msk [vmem:[#allocation3 + $0x20] sm:$0xfe] %vm1347, %v1329
        %1350 = vst.msk [vmem:[#allocation3 + $0x38] sm:$0xfe] %vm1347, %v1331
        %1351 = vst.msk [vmem:[#allocation3 + $0x50] sm:$0xfe] %vm1347, %v1333
        %1352 = vst.msk [vmem:[#allocation3 + $0x68] sm:$0xfe] %vm1347, %v1335
        %1353 = vst.msk [vmem:[#allocation3 + $0x80] sm:$0xfe] %vm1347, %v1337
        %1354 = vst.msk [vmem:[#allocation3 + $0x98] sm:$0xfe] %vm1347, %v1339
        %s1355 = scalar_lea.vmem [#allocation3], 168
        %1356 = vst.msk [vmem:[%s1355 + $0x8] sm:$0xff] %vm1221, 0.0
        %1357 = vst.msk [vmem:[#allocation3 + $0x8] sm:$0x1] %vm1223, 0.0
        %1358 = vst.msk [vmem:[#allocation3 + $0x20] sm:$0x1] %vm1223, 0.0
        %1359 = vst.msk [vmem:[#allocation3 + $0x38] sm:$0x1] %vm1223, 0.0
        %1360 = vst.msk [vmem:[#allocation3 + $0x50] sm:$0x1] %vm1223, 0.0
        %1361 = vst.msk [vmem:[#allocation3 + $0x68] sm:$0x1] %vm1223, 0.0
        %1362 = vst.msk [vmem:[#allocation3 + $0x80] sm:$0x1] %vm1223, 0.0
        %1363 = vst.msk [vmem:[#allocation3 + $0x98] sm:$0x1] %vm1223, 0.0
        %1364 = vrot.lane.b32.xlu0 %v1108, 96
        %v1365 = vpop.permute.xlu0 %1364
        %1366 = vrot.lane.b32.xlu0 %v1109, 96
        %v1367 = vpop.permute.xlu0 %1366
        %1368 = vrot.lane.b32.xlu0 %v1110, 96
        %v1369 = vpop.permute.xlu0 %1368
        %1370 = vrot.lane.b32.xlu0 %v1111, 96
        %v1371 = vpop.permute.xlu0 %1370
        %1372 = vrot.lane.b32.xlu0 %v1112, 96
        %v1373 = vpop.permute.xlu0 %1372
        %1374 = vrot.lane.b32.xlu0 %v1113, 96
        %v1375 = vpop.permute.xlu0 %1374
        %1376 = vrot.lane.b32.xlu0 %v1114, 96
        %v1377 = vpop.permute.xlu0 %1376
        %vm1385 = vcmask 1048320
        %1386 = vst.msk [vmem:[#allocation3 + $0x8] sm:$0xff] %vm1385, %v1365
        %1387 = vst.msk [vmem:[#allocation3 + $0x20] sm:$0xff] %vm1385, %v1367
        %1388 = vst.msk [vmem:[#allocation3 + $0x38] sm:$0xff] %vm1385, %v1369
        %1389 = vst.msk [vmem:[#allocation3 + $0x50] sm:$0xff] %vm1385, %v1371
        %1390 = vst.msk [vmem:[#allocation3 + $0x68] sm:$0xff] %vm1385, %v1373
        %1391 = vst.msk [vmem:[#allocation3 + $0x80] sm:$0xff] %vm1385, %v1375
        %1392 = vst.msk [vmem:[#allocation3 + $0x98] sm:$0xff] %vm1385, %v1377
        %1393 = vst.msk [vmem:[%s1355 + $0x8] sm:$0xff] %vm1385, 0.0
        %vm1401 = vcmask 260096
        %1402 = vst.msk [vmem:[#allocation3 + $0x10] sm:$0x7f] %vm1401, %v1186
        %1403 = vst.msk [vmem:[#allocation3 + $0x28] sm:$0x7f] %vm1401, %v1187
        %1404 = vst.msk [vmem:[#allocation3 + $0x40] sm:$0x7f] %vm1401, %v1188
        %1405 = vst.msk [vmem:[#allocation3 + $0x58] sm:$0x7f] %vm1401, %v1189
        %1406 = vst.msk [vmem:[#allocation3 + $0x70] sm:$0x7f] %vm1401, %v1190
        %1407 = vst.msk [vmem:[#allocation3 + $0x88] sm:$0x7f] %vm1401, %v1191
        %1408 = vst.msk [vmem:[#allocation3 + $0xa0] sm:$0x7f] %vm1401, %v1283
        %1409 = vst.msk [vmem:[%s1355 + $0x10] sm:$0xff] %vm1145, 0.0
        %1410 = vst.msk [vmem:[#allocation3 + $0x17] sm:$0x1] %vm1147, 0.0
        %1411 = vst.msk [vmem:[#allocation3 + $0x2f] sm:$0x1] %vm1147, 0.0
        %1412 = vst.msk [vmem:[#allocation3 + $0x47] sm:$0x1] %vm1147, 0.0
        %1413 = vst.msk [vmem:[#allocation3 + $0x5f] sm:$0x1] %vm1147, 0.0
        %1414 = vst.msk [vmem:[#allocation3 + $0x77] sm:$0x1] %vm1147, 0.0
        %1415 = vst.msk [vmem:[#allocation3 + $0x8f] sm:$0x1] %vm1147, 0.0
        %1416 = vst.msk [vmem:[#allocation3 + $0xa7] sm:$0x1] %vm1147, 0.0
        %v1417 = vld [vmem:[#allocation3] sm:$0xff]
        %v1418 = vld [vmem:[#allocation3 + $0x8] sm:$0xff]
        %v1419 = vld [vmem:[#allocation3 + $0x10] sm:$0xff]
        %v1420 = vld [vmem:[#allocation3 + $0x18] sm:$0xff]
        %v1421 = vld [vmem:[#allocation3 + $0x20] sm:$0xff]
        %v1422 = vld [vmem:[#allocation3 + $0x28] sm:$0xff]
        %v1423 = vld [vmem:[#allocation3 + $0x30] sm:$0xff]
        %v1424 = vld [vmem:[#allocation3 + $0x38] sm:$0xff]
        %v1425 = vld [vmem:[#allocation3 + $0x40] sm:$0xff]
        %v1426 = vld [vmem:[#allocation3 + $0x48] sm:$0xff]
        %v1427 = vld [vmem:[#allocation3 + $0x50] sm:$0xff]
        %v1428 = vld [vmem:[#allocation3 + $0x58] sm:$0xff]
        %v1429 = vld [vmem:[#allocation3 + $0x60] sm:$0xff]
        %v1430 = vld [vmem:[#allocation3 + $0x68] sm:$0xff]
        %v1431 = vld [vmem:[#allocation3 + $0x70] sm:$0xff]
        %v1432 = vld [vmem:[#allocation3 + $0x78] sm:$0xff]
        %v1433 = vld [vmem:[#allocation3 + $0x80] sm:$0xff]
        %v1434 = vld [vmem:[#allocation3 + $0x88] sm:$0xff]
        %v1435 = vld [vmem:[#allocation3 + $0x90] sm:$0xff]
        %v1436 = vld [vmem:[#allocation3 + $0x98] sm:$0xff]
        %v1437 = vld [vmem:[#allocation3 + $0xa0] sm:$0xff]
        %v1438 = vld [vmem:[#allocation3 + $0xa8] sm:$0xff]
        %v1439 = vld [vmem:[#allocation3 + $0xb0] sm:$0xff]
        %v1440 = vld [vmem:[#allocation3 + $0xb8] sm:$0xff]
        %v1441 = vld [vmem:[%s9] sm:$0xff]
        %v1442 = vld [vmem:[%s9 + $0x8] sm:$0xff]
        %v1443 = vld [vmem:[%s9 + $0x10] sm:$0xff]
        %v1444 = vld [vmem:[%s9 + $0x18] sm:$0xff]
        %v1445 = vld [vmem:[%s9 + $0x20] sm:$0xff]
        %v1446 = vld [vmem:[%s9 + $0x28] sm:$0xff]
        %v1447 = vld [vmem:[%s9 + $0x30] sm:$0xff]
        %v1448 = vld [vmem:[%s9 + $0x38] sm:$0xff]
        %v1449 = vld [vmem:[%s9 + $0x40] sm:$0xff]
        %v1450 = vld [vmem:[%s9 + $0x48] sm:$0xff]
        %v1451 = vld [vmem:[%s9 + $0x50] sm:$0xff]
        %v1452 = vld [vmem:[%s9 + $0x58] sm:$0xff]
        %v1453 = vld [vmem:[%s9 + $0x60] sm:$0xff]
        %v1454 = vld [vmem:[%s9 + $0x68] sm:$0xff]
        %v1455 = vld [vmem:[%s9 + $0x70] sm:$0xff]
        %v1456 = vld [vmem:[%s9 + $0x78] sm:$0xff]
        %v1457 = vld [vmem:[%s9 + $0x80] sm:$0xff]
        %v1458 = vld [vmem:[%s9 + $0x88] sm:$0xff]
        %v1459 = vld [vmem:[%s9 + $0x90] sm:$0xff]
        %v1460 = vld [vmem:[%s9 + $0x98] sm:$0xff]
        %v1461 = vld [vmem:[%s9 + $0xa0] sm:$0xff]
        %v1462 = vld [vmem:[%s9 + $0xa8] sm:$0xff]
        %v1463 = vld [vmem:[%s9 + $0xb0] sm:$0xff]
        %v1464 = vld [vmem:[%s9 + $0xb8] sm:$0xff]
        %v1465 = vld [vmem:[%s9 + $0xc0] sm:$0xff]
        %v1466 = vld [vmem:[%s9 + $0xc8] sm:$0xff]
        %v1467 = vld [vmem:[%s9 + $0xd0] sm:$0xff]
        %v1468 = vld [vmem:[%s9 + $0xd8] sm:$0xff]
        %v1469 = vld [vmem:[%s9 + $0xe0] sm:$0xff]
        %v1470 = vld [vmem:[%s9 + $0xe8] sm:$0xff]
        %v1471 = vld [vmem:[%s9 + $0xf0] sm:$0xff]
        %v1472 = vld [vmem:[%s9 + $0xf8] sm:$0xff]
        %v1473 = vld [vmem:[%s9 + $0x100] sm:$0xff]
        %v1474 = vld [vmem:[%s9 + $0x108] sm:$0xff]
        %v1475 = vld [vmem:[%s9 + $0x110] sm:$0xff]
        %v1476 = vld [vmem:[%s9 + $0x118] sm:$0xff]
        %v1478 = vsel %vm1145, %v1419, 0
        %v1481 = vsel %vm1145, %v1422, 0
        %v1484 = vsel %vm1145, %v1425, 0
        %v1487 = vsel %vm1145, %v1428, 0
        %v1490 = vsel %vm1145, %v1431, 0
        %v1493 = vsel %vm1145, %v1434, 0
        %v1496 = vsel %vm1145, %v1437, 0
        %v1499 = vsel %vm1145, %v1440, 0
        %1501 = vmatprep.subr.mxu0 0.0
        %1502 = vmatpush1.msra.mxu0 %v1456
        %1503 = vmatprep.subr.mxu0 0.0
        %1504 = vmatpush1.msra.mxu0 %v1455
        %1505 = vmatprep.subr.mxu0 0.0
        %1506 = vmatpush1.msra.mxu0 %v1454
        %1507 = vmatprep.subr.mxu0 0.0
        %1508 = vmatpush1.msra.mxu0 %v1453
        %1509 = vmatprep.subr.mxu0 0.0
        %1510 = vmatpush1.msra.mxu0 %v1452
        %1511 = vmatprep.subr.mxu0 0.0
        %1512 = vmatpush1.msra.mxu0 %v1451
        %1513 = vmatprep.subr.mxu0 0.0
        %1514 = vmatpush1.msra.mxu0 %v1450
        %1515 = vmatprep.subr.mxu0 0.0
        %1516 = vmatpush1.msra.mxu0 %v1449
        %1517 = vmatprep.subr.mxu0 0.0
        %1518 = vmatpush1.msra.mxu0 %v1448
        %1519 = vmatprep.subr.mxu0 0.0
        %1520 = vmatpush1.msra.mxu0 %v1447
        %1521 = vmatprep.subr.mxu0 0.0
        %1522 = vmatpush1.msra.mxu0 %v1446
        %1523 = vmatprep.subr.mxu0 0.0
        %1524 = vmatpush1.msra.mxu0 %v1445
        %1525 = vmatprep.subr.mxu0 0.0
        %1526 = vmatpush1.msra.mxu0 %v1444
        %1527 = vmatprep.subr.mxu0 0.0
        %1528 = vmatpush1.msra.mxu0 %v1443
        %1529 = vmatprep.subr.mxu0 0.0
        %1530 = vmatpush1.msra.mxu0 %v1442
        %1531 = vmatprep.subr.mxu0 0.0
        %1532 = vmatpush1.msra.mxu0 %v1441
        %1533 = vmatprep.subr.mxu0 0.0
        %1534 = vmatpush2.msra.mxu0 %v1472
        %1535 = vmatprep.subr.mxu0 0.0
        %1536 = vmatpush2.msra.mxu0 %v1471
        %1537 = vmatprep.subr.mxu0 0.0
        %1538 = vmatpush2.msra.mxu0 %v1470
        %1539 = vmatprep.subr.mxu0 0.0
        %1540 = vmatpush2.msra.mxu0 %v1469
        %1541 = vmatprep.subr.mxu0 0.0
        %1542 = vmatpush2.msra.mxu0 %v1468
        %1543 = vmatprep.subr.mxu0 0.0
        %1544 = vmatpush2.msra.mxu0 %v1467
        %1545 = vmatprep.subr.mxu0 0.0
        %1546 = vmatpush2.msra.mxu0 %v1466
        %1547 = vmatprep.subr.mxu0 0.0
        %1548 = vmatpush2.msra.mxu0 %v1465
        %1549 = vmatprep.subr.mxu0 0.0
        %1550 = vmatpush2.msra.mxu0 %v1464
        %1551 = vmatprep.subr.mxu0 0.0
        %1552 = vmatpush2.msra.mxu0 %v1463
        %1553 = vmatprep.subr.mxu0 0.0
        %1554 = vmatpush2.msra.mxu0 %v1462
        %1555 = vmatprep.subr.mxu0 0.0
        %1556 = vmatpush2.msra.mxu0 %v1461
        %1557 = vmatprep.subr.mxu0 0.0
        %1558 = vmatpush2.msra.mxu0 %v1460
        %1559 = vmatprep.subr.mxu0 0.0
        %1560 = vmatpush2.msra.mxu0 %v1459
        %1561 = vmatprep.subr.mxu0 0.0
        %1562 = vmatpush2.msra.mxu0 %v1458
        %1563 = vmatprep.subr.mxu0 0.0
        %1564 = vmatpush2.msra.mxu0 %v1457
        %1565 = vmatprep.mubr.f32.mxu0 %v1418
        %1566 = vmatmul.mubr.f32.gmra.mxu0 %v1417
        %v1567 = vpop.f32.mrf.mxu0
        %v1568 = vadd.f32 0.0, %v1567
        %v1569 = vpop.f32.mrf.mxu0
        %1570 = vmatprep.mubr.f32.mxu0 %v1421
        %1571 = vmatmul.mubr.f32.gmra.mxu0 %v1420
        %v1572 = vpop.f32.mrf.mxu0
        %v1573 = vadd.f32 0.0, %v1572
        %v1574 = vpop.f32.mrf.mxu0
        %1575 = vmatprep.mubr.f32.mxu0 %v1424
        %1576 = vmatmul.mubr.f32.gmra.mxu0 %v1423
        %v1577 = vpop.f32.mrf.mxu0
        %v1578 = vadd.f32 0.0, %v1577
        %v1579 = vpop.f32.mrf.mxu0
        %1580 = vmatprep.mubr.f32.mxu0 %v1427
        %1581 = vmatmul.mubr.f32.gmra.mxu0 %v1426
        %v1582 = vpop.f32.mrf.mxu0
        %v1583 = vadd.f32 0.0, %v1582
        %v1584 = vpop.f32.mrf.mxu0
        %1585 = vmatprep.mubr.f32.mxu0 %v1430
        %1586 = vmatmul.mubr.f32.gmra.mxu0 %v1429
        %v1587 = vpop.f32.mrf.mxu0
        %v1588 = vadd.f32 0.0, %v1587
        %v1589 = vpop.f32.mrf.mxu0
        %1590 = vmatprep.mubr.f32.mxu0 %v1433
        %1591 = vmatmul.mubr.f32.gmra.mxu0 %v1432
        %v1592 = vpop.f32.mrf.mxu0
        %v1593 = vadd.f32 0.0, %v1592
        %v1594 = vpop.f32.mrf.mxu0
        %1595 = vmatprep.mubr.f32.mxu0 %v1436
        %1596 = vmatmul.mubr.f32.gmra.mxu0 %v1435
        %v1597 = vpop.f32.mrf.mxu0
        %v1598 = vadd.f32 0.0, %v1597
        %v1599 = vpop.f32.mrf.mxu0
        %1600 = vmatprep.mubr.f32.mxu0 %v1439
        %1601 = vmatmul.mubr.f32.gmra.mxu0 %v1438
        %v1602 = vpop.f32.mrf.mxu0
        %v1603 = vadd.f32 0.0, %v1602
        %v1604 = vpop.f32.mrf.mxu0
        %1605 = vdwg.mxu0
        %1606 = vmatprep.subr.mxu0 0.0
        %1607 = vmatpush1.msra.mxu0 0.0
        %1608 = vmatprep.subr.mxu0 0.0
        %1609 = vmatpush1.msra.mxu0 0.0
        %1610 = vmatprep.subr.mxu0 0.0
        %1611 = vmatpush1.msra.mxu0 0.0
        %1612 = vmatprep.subr.mxu0 0.0
        %1613 = vmatpush1.msra.mxu0 0.0
        %1614 = vmatprep.subr.mxu0 0.0
        %1615 = vmatpush1.msra.mxu0 0.0
        %1616 = vmatprep.subr.mxu0 0.0
        %1617 = vmatpush1.msra.mxu0 0.0
        %1618 = vmatprep.subr.mxu0 0.0
        %1619 = vmatpush1.msra.mxu0 0.0
        %1620 = vmatprep.subr.mxu0 0.0
        %1621 = vmatpush1.msra.mxu0 0.0
        %1622 = vmatprep.subr.mxu0 0.0
        %1623 = vmatpush1.msra.mxu0 0.0
        %1624 = vmatprep.subr.mxu0 0.0
        %1625 = vmatpush1.msra.mxu0 0.0
        %1626 = vmatprep.subr.mxu0 0.0
        %1627 = vmatpush1.msra.mxu0 0.0
        %1628 = vmatprep.subr.mxu0 0.0
        %1629 = vmatpush1.msra.mxu0 0.0
        %1630 = vmatprep.subr.mxu0 0.0
        %1631 = vmatpush1.msra.mxu0 %v1476
        %1632 = vmatprep.subr.mxu0 0.0
        %1633 = vmatpush1.msra.mxu0 %v1475
        %1634 = vmatprep.subr.mxu0 0.0
        %1635 = vmatpush1.msra.mxu0 %v1474
        %1636 = vmatprep.subr.mxu0 0.0
        %1637 = vmatpush1.msra.mxu0 %v1473
        %1638 = vmatprep.subr.mxu0 0.0
        %1639 = vmatpush2.msra.mxu0 0.0
        %1640 = vmatprep.subr.mxu0 0.0
        %1641 = vmatpush2.msra.mxu0 0.0
        %1642 = vmatprep.subr.mxu0 0.0
        %1643 = vmatpush2.msra.mxu0 0.0
        %1644 = vmatprep.subr.mxu0 0.0
        %1645 = vmatpush2.msra.mxu0 0.0
        %1646 = vmatprep.subr.mxu0 0.0
        %1647 = vmatpush2.msra.mxu0 0.0
        %1648 = vmatprep.subr.mxu0 0.0
        %1649 = vmatpush2.msra.mxu0 0.0
        %1650 = vmatprep.subr.mxu0 0.0
        %1651 = vmatpush2.msra.mxu0 0.0
        %1652 = vmatprep.subr.mxu0 0.0
        %1653 = vmatpush2.msra.mxu0 0.0
        %1654 = vmatprep.subr.mxu0 0.0
        %1655 = vmatpush2.msra.mxu0 0.0
        %1656 = vmatprep.subr.mxu0 0.0
        %1657 = vmatpush2.msra.mxu0 0.0
        %1658 = vmatprep.subr.mxu0 0.0
        %1659 = vmatpush2.msra.mxu0 0.0
        %1660 = vmatprep.subr.mxu0 0.0
        %1661 = vmatpush2.msra.mxu0 0.0
        %1662 = vmatprep.subr.mxu0 0.0
        %1663 = vmatpush2.msra.mxu0 0.0
        %1664 = vmatprep.subr.mxu0 0.0
        %1665 = vmatpush2.msra.mxu0 0.0
        %1666 = vmatprep.subr.mxu0 0.0
        %1667 = vmatpush2.msra.mxu0 0.0
        %1668 = vmatprep.subr.mxu0 0.0
        %1669 = vmatpush2.msra.mxu0 0.0
        %1670 = vmatprep.mubr.f32.mxu0 0.0
        %1671 = vmatmul.mubr.f32.gmra.mxu0 %v1478
        %v1672 = vpop.f32.mrf.mxu0
        %v1673 = vadd.f32 %v1568, %v1672
        %v1674 = vpop.f32.mrf.mxu0
        %1675 = vmatprep.mubr.f32.mxu0 0.0
        %1676 = vmatmul.mubr.f32.gmra.mxu0 %v1481
        %v1677 = vpop.f32.mrf.mxu0
        %v1678 = vadd.f32 %v1573, %v1677
        %v1679 = vpop.f32.mrf.mxu0
        %1680 = vmatprep.mubr.f32.mxu0 0.0
        %1681 = vmatmul.mubr.f32.gmra.mxu0 %v1484
        %v1682 = vpop.f32.mrf.mxu0
        %v1683 = vadd.f32 %v1578, %v1682
        %v1684 = vpop.f32.mrf.mxu0
        %1685 = vmatprep.mubr.f32.mxu0 0.0
        %1686 = vmatmul.mubr.f32.gmra.mxu0 %v1487
        %v1687 = vpop.f32.mrf.mxu0
        %v1688 = vadd.f32 %v1583, %v1687
        %v1689 = vpop.f32.mrf.mxu0
        %1690 = vmatprep.mubr.f32.mxu0 0.0
        %1691 = vmatmul.mubr.f32.gmra.mxu0 %v1490
        %v1692 = vpop.f32.mrf.mxu0
        %v1693 = vadd.f32 %v1588, %v1692
        %v1694 = vpop.f32.mrf.mxu0
        %1695 = vmatprep.mubr.f32.mxu0 0.0
        %1696 = vmatmul.mubr.f32.gmra.mxu0 %v1493
        %v1697 = vpop.f32.mrf.mxu0
        %v1698 = vadd.f32 %v1593, %v1697
        %v1699 = vpop.f32.mrf.mxu0
        %1700 = vmatprep.mubr.f32.mxu0 0.0
        %1701 = vmatmul.mubr.f32.gmra.mxu0 %v1496
        %v1702 = vpop.f32.mrf.mxu0
        %v1703 = vadd.f32 %v1598, %v1702
        %v1704 = vpop.f32.mrf.mxu0
        %1705 = vmatprep.mubr.f32.mxu0 0.0
        %1706 = vmatmul.mubr.f32.gmra.mxu0 %v1499
        %v1707 = vpop.f32.mrf.mxu0
        %v1708 = vadd.f32 %v1603, %v1707
        %v1709 = vpop.f32.mrf.mxu0
        %1710 = vdwg.mxu0
        %v1711 = vsel %vm617, %v483, 0
        %v1713 = vsel %vm617, %v484, 0
        %v1715 = vsel %vm617, %v485, 0
        %v1717 = vsel %vm617, %v486, 0
        %v1719 = vsel %vm617, %v487, 0
        %v1721 = vsel %vm617, %v488, 0
        %v1723 = vsel %vm617, %v489, 0
        %v1725 = vsel %vm617, %v490, 0
        %1727 = vmatprep.subr.mxu0 0.0
        %1728 = vmatpush1.msra.mxu0 0.0
        %1729 = vmatprep.subr.mxu0 0.0
        %1730 = vmatpush1.msra.mxu0 0.0
        %1731 = vmatprep.subr.mxu0 0.0
        %1732 = vmatpush1.msra.mxu0 0.0
        %1733 = vmatprep.subr.mxu0 0.0
        %1734 = vmatpush1.msra.mxu0 0.0
        %1735 = vmatprep.subr.mxu0 0.0
        %1736 = vmatpush1.msra.mxu0 0.0
        %1737 = vmatprep.subr.mxu0 0.0
        %1738 = vmatpush1.msra.mxu0 0.0
        %1739 = vmatprep.subr.mxu0 0.0
        %1740 = vmatpush1.msra.mxu0 0.0
        %1741 = vmatprep.subr.mxu0 0.0
        %1742 = vmatpush1.msra.mxu0 0.0
        %1743 = vmatprep.subr.mxu0 0.0
        %1744 = vmatpush1.msra.mxu0 0.0
        %1745 = vmatprep.subr.mxu0 0.0
        %1746 = vmatpush1.msra.mxu0 0.0
        %1747 = vmatprep.subr.mxu0 0.0
        %1748 = vmatpush1.msra.mxu0 0.0
        %1749 = vmatprep.subr.mxu0 0.0
        %1750 = vmatpush1.msra.mxu0 0.0
        %1751 = vmatprep.subr.mxu0 0.0
        %1752 = vmatpush1.msra.mxu0 0.0
        %1753 = vmatprep.subr.mxu0 0.0
        %1754 = vmatpush1.msra.mxu0 0.0
        %1755 = vmatprep.subr.mxu0 0.0
        %1756 = vmatpush1.msra.mxu0 %v1076
        %1757 = vmatprep.subr.mxu0 0.0
        %1758 = vmatpush1.msra.mxu0 %v1075
        %1759 = vmatprep.subr.mxu0 0.0
        %1760 = vmatpush2.msra.mxu0 0.0
        %1761 = vmatprep.subr.mxu0 0.0
        %1762 = vmatpush2.msra.mxu0 0.0
        %1763 = vmatprep.subr.mxu0 0.0
        %1764 = vmatpush2.msra.mxu0 0.0
        %1765 = vmatprep.subr.mxu0 0.0
        %1766 = vmatpush2.msra.mxu0 0.0
        %1767 = vmatprep.subr.mxu0 0.0
        %1768 = vmatpush2.msra.mxu0 0.0
        %1769 = vmatprep.subr.mxu0 0.0
        %1770 = vmatpush2.msra.mxu0 0.0
        %1771 = vmatprep.subr.mxu0 0.0
        %1772 = vmatpush2.msra.mxu0 0.0
        %1773 = vmatprep.subr.mxu0 0.0
        %1774 = vmatpush2.msra.mxu0 0.0
        %1775 = vmatprep.subr.mxu0 0.0
        %1776 = vmatpush2.msra.mxu0 0.0
        %1777 = vmatprep.subr.mxu0 0.0
        %1778 = vmatpush2.msra.mxu0 0.0
        %1779 = vmatprep.subr.mxu0 0.0
        %1780 = vmatpush2.msra.mxu0 0.0
        %1781 = vmatprep.subr.mxu0 0.0
        %1782 = vmatpush2.msra.mxu0 0.0
        %1783 = vmatprep.subr.mxu0 0.0
        %1784 = vmatpush2.msra.mxu0 0.0
        %1785 = vmatprep.subr.mxu0 0.0
        %1786 = vmatpush2.msra.mxu0 0.0
        %1787 = vmatprep.subr.mxu0 0.0
        %1788 = vmatpush2.msra.mxu0 0.0
        %1789 = vmatprep.subr.mxu0 0.0
        %1790 = vmatpush2.msra.mxu0 0.0
        %1791 = vmatprep.mubr.f32.mxu0 0.0
        %1792 = vmatmul.mubr.f32.gmra.mxu0 %v1711
        %v1793 = vpop.f32.mrf.mxu0
        %v1794 = vadd.f32 %v1673, %v1793
        %v1795 = vpop.f32.mrf.mxu0
        %1796 = vmatprep.mubr.f32.mxu0 0.0
        %1797 = vmatmul.mubr.f32.gmra.mxu0 %v1713
        %v1798 = vpop.f32.mrf.mxu0
        %v1799 = vadd.f32 %v1678, %v1798
        %v1800 = vpop.f32.mrf.mxu0
        %1801 = vmatprep.mubr.f32.mxu0 0.0
        %1802 = vmatmul.mubr.f32.gmra.mxu0 %v1715
        %v1803 = vpop.f32.mrf.mxu0
        %v1804 = vadd.f32 %v1683, %v1803
        %v1805 = vpop.f32.mrf.mxu0
        %1806 = vmatprep.mubr.f32.mxu0 0.0
        %1807 = vmatmul.mubr.f32.gmra.mxu0 %v1717
        %v1808 = vpop.f32.mrf.mxu0
        %v1809 = vadd.f32 %v1688, %v1808
        %v1810 = vpop.f32.mrf.mxu0
        %1811 = vmatprep.mubr.f32.mxu0 0.0
        %1812 = vmatmul.mubr.f32.gmra.mxu0 %v1719
        %v1813 = vpop.f32.mrf.mxu0
        %v1814 = vadd.f32 %v1693, %v1813
        %v1815 = vpop.f32.mrf.mxu0
        %1816 = vmatprep.mubr.f32.mxu0 0.0
        %1817 = vmatmul.mubr.f32.gmra.mxu0 %v1721
        %v1818 = vpop.f32.mrf.mxu0
        %v1819 = vadd.f32 %v1698, %v1818
        %v1820 = vpop.f32.mrf.mxu0
        %1821 = vmatprep.mubr.f32.mxu0 0.0
        %1822 = vmatmul.mubr.f32.gmra.mxu0 %v1723
        %v1823 = vpop.f32.mrf.mxu0
        %v1824 = vadd.f32 %v1703, %v1823
        %v1825 = vpop.f32.mrf.mxu0
        %1826 = vmatprep.mubr.f32.mxu0 0.0
        %1827 = vmatmul.mubr.f32.gmra.mxu0 %v1725
        %v1828 = vpop.f32.mrf.mxu0
        %v1829 = vadd.f32 %v1708, %v1828
        %v1830 = vpop.f32.mrf.mxu0
        %1831 = vdwg.mxu0
        %1832 = vst.msk [vmem:[%s424] sm:$0xff] %vm1145, %v1794
        %1833 = vst.msk [vmem:[%s424 + $0x8] sm:$0xff] %vm1145, %v1799
        %1834 = vst.msk [vmem:[%s424 + $0x10] sm:$0xff] %vm1145, %v1804
        %1835 = vst.msk [vmem:[%s424 + $0x18] sm:$0xff] %vm1145, %v1809
        %1836 = vst.msk [vmem:[%s424 + $0x20] sm:$0xff] %vm1145, %v1814
        %1837 = vst.msk [vmem:[%s424 + $0x28] sm:$0xff] %vm1145, %v1819
        %1838 = vst.msk [vmem:[%s424 + $0x30] sm:$0xff] %vm1145, %v1824
        %1839 = vst.msk [vmem:[%s424 + $0x38] sm:$0xff] %vm1145, %v1829
        %s1840 = sand.u32 %s284, 1
        %s1841 = scalar_lea.sflag [#allocation5], %s1840
        %s1842 = sand.u32 %s284, 1
        %s1843 = smul.addr %s1842, 64
        %s1844 = scalar_lea.vmem [#allocation4], %s1843
        // Predicated region
        $region65: #{tpu_custom_call.1} parent=63 // pred_check
          %p1845 = pneg %p294
        $region66: #{tpu_custom_call.1} parent=63 // pred_check_branch
          %1847 = sbr.rel (%p1845) target = $region68
        $region67: #{tpu_custom_call.1} parent=63 // pred_region
          %s1849 = ssub.s32 1024, 1024
          %1850 = vsyncadd %s1841, %s1849
          %s1851 = smul.addr %s25, 8
          %s1852 = smul.addr %s1851, 128
          %s1853 = scalar_lea.hbm %s11, %s1852
          %s1854 = sshll.u32 %s1844, 4
          %s1855 = int_to_ptr.vmem [resolvable:$true] %s1854
          %1860 = dma.vmem_to_hbm [thread:$0]  %s1855, 1024, %s1853, %s1841, 128, 128, 8
        $region68: #{tpu_custom_call.1} parent=63 // pred_fallthru
          _
      $region64: #{tpu_custom_call.1} parent=5 // pred_fallthru
        _
      %p1861 = scmp.le.s32.totalorder 2, %s20
      // Predicated region
      $region69: #{tpu_custom_call.1} parent=5 // pred_check
        %p1862 = pneg %p1861
      $region70: #{tpu_custom_call.1} parent=5 // pred_check_branch
        %1864 = sbr.rel (%p1862) target = $region72
      $region71: #{tpu_custom_call.1} parent=5 // pred_region
        %s1865 = ssub.s32 %s20, 2
        // Predicated region
        $region73: #{tpu_custom_call.1} parent=71 // pred_check
          %p1866 = pneg %p300
        $region74: #{tpu_custom_call.1} parent=71 // pred_check_branch
          %1868 = sbr.rel (%p1866) target = $region76
        $region75: #{tpu_custom_call.1} parent=71 // pred_region
          %s1869 = sand.u32 %s285, 1
          %s1870 = scalar_lea.sflag [#allocation5], %s1869
          %s1871 = sand.u32 %s285, 1
          %s1872 = smul.addr %s1871, 64
          %s1873 = scalar_lea.vmem [#allocation4], %s1872
          %1874 = dma.done %s1870, 1024
        $region76: #{tpu_custom_call.1} parent=71 // pred_fallthru
          _
      $region72: #{tpu_custom_call.1} parent=5 // pred_fallthru
        _
    $region6: #{tpu_custom_call.1} parent=1 // loop_footer
      %s24 = sadd.s32 1, %s20
    $region7: #{tpu_custom_call.1} parent=1 // loop_footer_branch
      %19 = sbr.rel target = $region3
    $region8: #{tpu_custom_call.1} parent=1 // loop_exit
      _
    %1875 = vsyncpa [#allocation5], 1
    %s1876 = scalar_lea.sflag [#allocation5], 1
    %1877 = vsyncpa %s1876, 1

</llo_original>
